<compile_context>
chip_gen: v7x
topology: tpu7x:2x2x1
jax: 0.10.0
libtpu: 0.0.40
codegen_flags: <defaults>
</compile_context>

<pallas_src>
import jax
import jax.numpy as jnp
from jax.experimental import pallas as pl
from jax.experimental.pallas import tpu as pltpu


# ----------------------------------------------------------------------------
# Fused JEPA forward kernel (single grid point, everything resident in VMEM)
# ----------------------------------------------------------------------------
def _jepa_fused_kernel(
    st_ref, st1_ref, act_ref,
    ew1, eb1, ew2, eb2, ew3, eb3,          # fused [target | online] encoder (3 layers)
    aw, ab,                                # action embedding
    p1wz, p1wa, p1b, p2w, p2b, p3w, p3b,   # predictor (L1 pre-split, no concat needed)
    out_ref,                               # (2B, slab_w) lane-dense output slab
):
    f32, bf16 = jnp.float32, jnp.bfloat16
    B = act_ref.shape[0]
    latent = p1wz.shape[0]
    p_out = p3w.shape[1]

    def dense(x_bf16, w_ref, b_ref):
        # bf16 operands hit the native MXU path; accumulate + bias add in f32.
        return jnp.dot(x_bf16, w_ref[...], preferred_element_type=f32) + b_ref[...]

    def relu(x):
        return jnp.maximum(x, 0.0)

    def erf(x):
        # Abramowitz & Stegun 7.1.26 (max abs err 1.5e-7). Divide goes to the EUP
        # (approx reciprocal), exp also EUP; the rest is VPU f32 (v5e-friendly).
        ax = jnp.abs(x)
        t = pl.reciprocal(1.0 + 0.3275911 * ax, approx=True)
        poly = ((((1.061405429 * t - 1.453152027) * t + 1.421413741) * t
                 - 0.284496736) * t + 0.254829592) * t
        y = 1.0 - poly * jnp.exp(-ax * ax)
        return jnp.where(x < 0.0, -y, y)

    def gelu(x):  # exact GELU == torch nn.GELU() default
        return 0.5 * x * (1.0 + erf(x * 0.7071067811865476))

    # Both frames share encoder weights -> one (2B, in_dim) pass. Concat happens
    # in VMEM (the wrapper does not materialize an HBM copy).
    x2 = jnp.concatenate([st_ref[...], st1_ref[...]], axis=0)   # (2B, in_dim) bf16

    # ---- fused target|online encoder ----
    h = relu(dense(x2, ew1, eb1)).astype(bf16)        # (2B, 2H)
    h = relu(dense(h, ew2, eb2)).astype(bf16)         # (2B, 2H)
    z = dense(h, ew3, eb3)                            # (2B, 2L) f32 = [tz | oz]

    # ---- action embedding ----
    a_emb = dense(act_ref[...], aw, ab)               # (B, A_emb) f32

    # ---- predictor: L1 of concat([target(s_t), a_emb]) as a split matmul ----
    z_t_st = z[:B, :latent].astype(bf16)              # target encoding of s_t
    h = dense(z_t_st, p1wz, p1b) + jnp.dot(
        a_emb.astype(bf16), p1wa[...], preferred_element_type=f32)
    h = gelu(h)
    h = gelu(dense(h.astype(bf16), p2w, p2b))
    pred = dense(h.astype(bf16), p3w, p3b)            # (B, p_out) f32

    # ---- single lane-dense (multiple-of-128) store: [tz | oz | pred | 0-pad] ----
    pred_rows = jnp.concatenate([pred, jnp.zeros((B, p_out), f32)], axis=0)  # (2B, p_out)
    pieces = [z, pred_rows]
    pad_w = out_ref.shape[1] - z.shape[1] - p_out
    if pad_w > 0:
        pieces.append(jnp.zeros((2 * B, pad_w), f32))
    out_ref[...] = jnp.concatenate(pieces, axis=1)


# ----------------------------------------------------------------------------
# Parameter construction (deterministic, torch.nn.Linear-style init)
# ----------------------------------------------------------------------------
def make_jepa_params(key, *, in_dim, enc_hidden, latent_dim,
                     action_dim, action_emb_dim, pred_hidden, pred_out):
    keys = jax.random.split(key, 7)
    bf16, f32 = jnp.bfloat16, jnp.float32

    def init(k, d_in, d_out):
        kw, kb = jax.random.split(k)
        s = 1.0 / float(d_in) ** 0.5
        w = jax.random.uniform(kw, (d_in, d_out), f32, -s, s).astype(bf16)
        b = jax.random.uniform(kb, (1, d_out), f32, -s, s)
        return w, b  # bf16 weight (MXU-native), f32 bias

    # Online encoder; target starts as an exact copy
    # (JEPA._copy_weights_to_target_encoder). An EMA step would produce new arrays.
    o1w, o1b = init(keys[0], in_dim, enc_hidden)
    o2w, o2b = init(keys[1], enc_hidden, enc_hidden)
    o3w, o3b = init(keys[2], enc_hidden, latent_dim)
    t1w, t1b, t2w, t2b, t3w, t3b = o1w, o1b, o2w, o2b, o3w, o3b

    def zero(r, c):
        return jnp.zeros((r, c), bf16)

    # Kernel-side fused encoder: layer 1 column-fused (shared input x2),
    # layers 2/3 block-diagonal so [target | online] columns stay independent.
    encoder_fused = {
        "w1": jnp.concatenate([t1w, o1w], axis=1),                       # (in, 2H)
        "b1": jnp.concatenate([t1b, o1b], axis=1),
        "w2": jnp.concatenate(
            [jnp.concatenate([t2w, zero(enc_hidden, enc_hidden)], axis=1),
             jnp.concatenate([zero(enc_hidden, enc_hidden), o2w], axis=1)],
            axis=0),                                                     # (2H, 2H)
        "b2": jnp.concatenate([t2b, o2b], axis=1),
        "w3": jnp.concatenate(
            [jnp.concatenate([t3w, zero(enc_hidden, latent_dim)], axis=1),
             jnp.concatenate([zero(enc_hidden, latent_dim), o3w], axis=1)],
            axis=0),                                                     # (2H, 2L)
        "b3": jnp.concatenate([t3b, o3b], axis=1),
    }

    online_encoder = {"l1": {"w": o1w, "b": o1b},
                      "l2": {"w": o2w, "b": o2b},
                      "l3": {"w": o3w, "b": o3b}}
    target_encoder = {"l1": {"w": t1w, "b": t1b},
                      "l2": {"w": t2w, "b": t2b},
                      "l3": {"w": t3w, "b": t3b}}

    aw, ab = init(keys[3], action_dim, action_emb_dim)
    action_embedding = {"w": aw, "b": ab}

    # Predictor L1 acts on concat([latent, action_emb]); store it pre-split so the
    # kernel computes z @ W1[:latent] + a @ W1[latent:] with no concat.
    w1, b1 = init(keys[4], latent_dim + action_emb_dim, pred_hidden)
    p2w, p2b = init(keys[5], pred_hidden, pred_hidden)
    p3w, p3b = init(keys[6], pred_hidden, pred_out)
    predictor = {
        "l1": {"w_z": w1[:latent_dim], "w_a": w1[latent_dim:], "b": b1},
        "l2": {"w": p2w, "b": p2b},
        "l3": {"w": p3w, "b": p3b},
    }

    return {
        "encoder_fused": encoder_fused,
        "online_encoder": online_encoder,
        "target_encoder": target_encoder,
        "action_embedding": action_embedding,
        "predictor": predictor,
    }


# ----------------------------------------------------------------------------
# JEPA forward (target_encoder_mode='default', eval / no dropout)
# ----------------------------------------------------------------------------
def jepa_forward(params, s_t, action, s_t_plus_1):
    B = s_t.shape[0]
    f32, bf16 = jnp.float32, jnp.bfloat16

    # bf16 inputs: halves the dominant input DMA; matmuls are bf16 anyway.
    st = s_t.reshape(B, -1).astype(bf16)
    st1 = s_t_plus_1.reshape(B, -1).astype(bf16)
    act = action.astype(bf16)

    enc = params["encoder_fused"]
    ae, pr = params["action_embedding"], params["predictor"]

    in_dim = st.shape[1]
    two_h = enc["w1"].shape[1]
    latent = pr["l1"]["w_z"].shape[0]
    a_dim = act.shape[1]
    a_emb = ae["w"].shape[1]
    p_hid = pr["l2"]["w"].shape[0]
    p_out = pr["l3"]["w"].shape[1]

    # Lane-dense output slab: [tz(latent) | oz(latent) | pred(p_out) | 0-pad] to a 128 multiple.
    slab_w = ((2 * latent + p_out + 127) // 128) * 128

    flat_args = (
        st, st1, act,
        enc["w1"], enc["b1"], enc["w2"], enc["b2"], enc["w3"], enc["b3"],
        ae["w"], ae["b"],
        pr["l1"]["w_z"], pr["l1"]["w_a"], pr["l1"]["b"],
        pr["l2"]["w"], pr["l2"]["b"], pr["l3"]["w"], pr["l3"]["b"],
    )

    out_shape = jax.ShapeDtypeStruct((2 * B, slab_w), f32)

    mm = lambda m, k, n: 2 * m * k * n
    flops = (mm(2 * B, in_dim, two_h) + mm(2 * B, two_h, two_h)
             + mm(2 * B, two_h, 2 * latent)
             + mm(B, a_dim, a_emb)
             + mm(B, latent, p_hid) + mm(B, a_emb, p_hid)
             + mm(B, p_hid, p_hid) + mm(B, p_hid, p_out))
    transcendentals = 2 * 2 * B * p_hid  # exp + approx-reciprocal per exact-GELU element
    bytes_accessed = sum(int(a.size) * a.dtype.itemsize for a in flat_args)
    bytes_accessed += 2 * B * slab_w * 4

    vmem = lambda: pl.BlockSpec(memory_space=pltpu.MemorySpace.VMEM)

    slab = pl.pallas_call(
        _jepa_fused_kernel,
        out_shape=out_shape,
        in_specs=[vmem() for _ in flat_args],
        out_specs=vmem(),
        compiler_params=pltpu.CompilerParams(vmem_limit_bytes=32 * 1024 * 1024),
        cost_estimate=pl.CostEstimate(flops=flops,
                                      transcendentals=transcendentals,
                                      bytes_accessed=bytes_accessed),
    )(*flat_args)

    tz = slab[:, :latent]                       # target enc. of [s_t; s_{t+1}]
    oz = slab[:, latent:2 * latent]             # online enc. of [s_t; s_{t+1}]
    pred = slab[:B, 2 * latent:2 * latent + p_out]

    # target_encoder branch is under torch.no_grad()/.detach() -> stop_gradient.
    target_for_predictor = jax.lax.stop_gradient(tz[B:])
    online_s_t = oz[:B]
    online_s_t_plus_1 = oz[B:]
    return pred, target_for_predictor, online_s_t, online_s_t_plus_1


# ----------------------------------------------------------------------------
# Pure-JAX reference (for correctness check; mirrors the kernel's bf16 inputs/weights)
# ----------------------------------------------------------------------------
def _reference_forward(params, s_t, action, s_t_plus_1):
    f32 = jnp.float32
    B = s_t.shape[0]
    st = s_t.reshape(B, -1).astype(jnp.bfloat16).astype(f32)
    st1 = s_t_plus_1.reshape(B, -1).astype(jnp.bfloat16).astype(f32)
    a_in = action.astype(jnp.bfloat16).astype(f32)

    def dense(x, layer, act=None):
        y = x @ layer["w"].astype(f32) + layer["b"]
        if act == "relu":
            y = jnp.maximum(y, 0.0)
        elif act == "gelu":
            y = jax.nn.gelu(y, approximate=False)
        return y

    def enc(p, x):
        h = dense(x, p["l1"], "relu")
        h = dense(h, p["l2"], "relu")
        return dense(h, p["l3"])

    t_st = enc(params["target_encoder"], st)
    t_st1 = enc(params["target_encoder"], st1)
    o_st = enc(params["online_encoder"], st)
    o_st1 = enc(params["online_encoder"], st1)

    a = a_in @ params["action_embedding"]["w"].astype(f32) + params["action_embedding"]["b"]

    pr = params["predictor"]
    h = (t_st @ pr["l1"]["w_z"].astype(f32) + a @ pr["l1"]["w_a"].astype(f32)
         + pr["l1"]["b"])
    h = jax.nn.gelu(h, approximate=False)
    h = jax.nn.gelu(h @ pr["l2"]["w"].astype(f32) + pr["l2"]["b"], approximate=False)
    pred = h @ pr["l3"]["w"].astype(f32) + pr["l3"]["b"]
    return pred, t_st1, o_st, o_st1


# ----------------------------------------------------------------------------
if __name__ == "__main__":
    B = 2
    C, H, W = 4, 16, 16
    action_dim = 8
    action_emb_dim = 16
    latent_dim = 32
    enc_hidden = 32
    pred_hidden = 64
    pred_out = latent_dim  # predictor_output_dim must equal latent_dim

    key = jax.random.PRNGKey(0)
    k_params, k_st, k_act, k_st1 = jax.random.split(key, 4)

    params = make_jepa_params(
        k_params,
        in_dim=C * H * W,
        enc_hidden=enc_hidden,
        latent_dim=latent_dim,
        action_dim=action_dim,
        action_emb_dim=action_emb_dim,
        pred_hidden=pred_hidden,
        pred_out=pred_out,
    )

    s_t = jax.random.normal(k_st, (B, C, H, W), jnp.float32)
    action = jax.random.normal(k_act, (B, action_dim), jnp.float32)
    s_t_plus_1 = jax.random.normal(k_st1, (B, C, H, W), jnp.float32)

    fwd = jax.jit(jepa_forward)
    pred, target, online_st, online_st1 = fwd(params, s_t, action, s_t_plus_1)
    jax.block_until_ready((pred, target, online_st, online_st1))

    assert pred.shape == (B, pred_out)
    assert target.shape == (B, latent_dim)
    assert online_st.shape == (B, latent_dim)
    assert online_st1.shape == (B, latent_dim)

    # Correctness vs. pure-JAX reference (bf16-matmul tolerance).
    r_pred, r_target, r_ost, r_ost1 = _reference_forward(params, s_t, action, s_t_plus_1)
    assert bool(jnp.allclose(pred, r_pred, atol=5e-2, rtol=5e-2))
    assert bool(jnp.allclose(target, r_target, atol=5e-2, rtol=5e-2))
    assert bool(jnp.allclose(online_st, r_ost, atol=5e-2, rtol=5e-2))
    assert bool(jnp.allclose(online_st1, r_ost1, atol=5e-2, rtol=5e-2))

    print("KERNEL_OK")
</pallas_src>

<mosaic_0001>
module attributes {stable_mosaic.version = 11 : i64} {
  func.func @_jepa_fused_kernel(%arg0: memref<2x1024xbf16, #tpu.memory_space<vmem>>, %arg1: memref<2x1024xbf16, #tpu.memory_space<vmem>>, %arg2: memref<2x8xbf16, #tpu.memory_space<vmem>>, %arg3: memref<1024x64xbf16, #tpu.memory_space<vmem>>, %arg4: memref<1x64xf32, #tpu.memory_space<vmem>>, %arg5: memref<64x64xbf16, #tpu.memory_space<vmem>>, %arg6: memref<1x64xf32, #tpu.memory_space<vmem>>, %arg7: memref<64x64xbf16, #tpu.memory_space<vmem>>, %arg8: memref<1x64xf32, #tpu.memory_space<vmem>>, %arg9: memref<8x16xbf16, #tpu.memory_space<vmem>>, %arg10: memref<1x16xf32, #tpu.memory_space<vmem>>, %arg11: memref<32x64xbf16, #tpu.memory_space<vmem>>, %arg12: memref<16x64xbf16, #tpu.memory_space<vmem>>, %arg13: memref<1x64xf32, #tpu.memory_space<vmem>>, %arg14: memref<64x64xbf16, #tpu.memory_space<vmem>>, %arg15: memref<1x64xf32, #tpu.memory_space<vmem>>, %arg16: memref<64x32xbf16, #tpu.memory_space<vmem>>, %arg17: memref<1x32xf32, #tpu.memory_space<vmem>>, %arg18: memref<4x128xf32, #tpu.memory_space<vmem>>) attributes {dimension_semantics = [], scalar_prefetch = 0 : i64, scratch_operands = 0 : i64, tpu.core_type = #tpu.core_type<tc>} {
    %c0 = arith.constant 0 : index
    %c0_0 = arith.constant 0 : index
    %0 = vector.load %arg0[%c0, %c0_0] : memref<2x1024xbf16, #tpu.memory_space<vmem>>, vector<2x1024xbf16>
    %c0_1 = arith.constant 0 : index
    %c0_2 = arith.constant 0 : index
    %1 = vector.load %arg1[%c0_1, %c0_2] : memref<2x1024xbf16, #tpu.memory_space<vmem>>, vector<2x1024xbf16>
    %2 = tpu.concatenate %0, %1 in 0 : vector<2x1024xbf16>, vector<2x1024xbf16> -> vector<4x1024xbf16>
    %c0_3 = arith.constant 0 : index
    %c0_4 = arith.constant 0 : index
    %3 = vector.load %arg3[%c0_3, %c0_4] : memref<1024x64xbf16, #tpu.memory_space<vmem>>, vector<1024x64xbf16>
    %cst = arith.constant dense<0.000000e+00> : vector<4x64xf32>
    %4 = tpu.matmul %2, %3, %cst {dimension_numbers = #tpu.dot_dimension_numbers<[1], [0], [0], [1], [0, 0, 1, 1], [], []>} : vector<4x1024xbf16>, vector<1024x64xbf16>, vector<4x64xf32> -> vector<4x64xf32>
    %c0_5 = arith.constant 0 : index
    %c0_6 = arith.constant 0 : index
    %5 = vector.load %arg4[%c0_5, %c0_6] : memref<1x64xf32, #tpu.memory_space<vmem>>, vector<1x64xf32>
    %6 = vector.broadcast %5 : vector<1x64xf32> to vector<4x64xf32>
    %7 = arith.addf %4, %6 : vector<4x64xf32>
    %cst_7 = arith.constant 0.000000e+00 : f32
    %8 = vector.broadcast %cst_7 : f32 to vector<4x64xf32>
    %9 = arith.maximumf %7, %8 : vector<4x64xf32>
    %10 = arith.truncf %9 : vector<4x64xf32> to vector<4x64xbf16>
    %c0_8 = arith.constant 0 : index
    %c0_9 = arith.constant 0 : index
    %11 = vector.load %arg5[%c0_8, %c0_9] : memref<64x64xbf16, #tpu.memory_space<vmem>>, vector<64x64xbf16>
    %cst_10 = arith.constant dense<0.000000e+00> : vector<4x64xf32>
    %12 = tpu.matmul %10, %11, %cst_10 {dimension_numbers = #tpu.dot_dimension_numbers<[1], [0], [0], [1], [0, 0, 1, 1], [], []>} : vector<4x64xbf16>, vector<64x64xbf16>, vector<4x64xf32> -> vector<4x64xf32>
    %c0_11 = arith.constant 0 : index
    %c0_12 = arith.constant 0 : index
    %13 = vector.load %arg6[%c0_11, %c0_12] : memref<1x64xf32, #tpu.memory_space<vmem>>, vector<1x64xf32>
    %14 = vector.broadcast %13 : vector<1x64xf32> to vector<4x64xf32>
    %15 = arith.addf %12, %14 : vector<4x64xf32>
    %cst_13 = arith.constant 0.000000e+00 : f32
    %16 = vector.broadcast %cst_13 : f32 to vector<4x64xf32>
    %17 = arith.maximumf %15, %16 : vector<4x64xf32>
    %18 = arith.truncf %17 : vector<4x64xf32> to vector<4x64xbf16>
    %c0_14 = arith.constant 0 : index
    %c0_15 = arith.constant 0 : index
    %19 = vector.load %arg7[%c0_14, %c0_15] : memref<64x64xbf16, #tpu.memory_space<vmem>>, vector<64x64xbf16>
    %cst_16 = arith.constant dense<0.000000e+00> : vector<4x64xf32>
    %20 = tpu.matmul %18, %19, %cst_16 {dimension_numbers = #tpu.dot_dimension_numbers<[1], [0], [0], [1], [0, 0, 1, 1], [], []>} : vector<4x64xbf16>, vector<64x64xbf16>, vector<4x64xf32> -> vector<4x64xf32>
    %c0_17 = arith.constant 0 : index
    %c0_18 = arith.constant 0 : index
    %21 = vector.load %arg8[%c0_17, %c0_18] : memref<1x64xf32, #tpu.memory_space<vmem>>, vector<1x64xf32>
    %22 = vector.broadcast %21 : vector<1x64xf32> to vector<4x64xf32>
    %23 = arith.addf %20, %22 : vector<4x64xf32>
    %c0_19 = arith.constant 0 : index
    %c0_20 = arith.constant 0 : index
    %24 = vector.load %arg2[%c0_19, %c0_20] : memref<2x8xbf16, #tpu.memory_space<vmem>>, vector<2x8xbf16>
    %c0_21 = arith.constant 0 : index
    %c0_22 = arith.constant 0 : index
    %25 = vector.load %arg9[%c0_21, %c0_22] : memref<8x16xbf16, #tpu.memory_space<vmem>>, vector<8x16xbf16>
    %cst_23 = arith.constant dense<0.000000e+00> : vector<2x16xf32>
    %26 = tpu.matmul %24, %25, %cst_23 {dimension_numbers = #tpu.dot_dimension_numbers<[1], [0], [0], [1], [0, 0, 1, 1], [], []>} : vector<2x8xbf16>, vector<8x16xbf16>, vector<2x16xf32> -> vector<2x16xf32>
    %c0_24 = arith.constant 0 : index
    %c0_25 = arith.constant 0 : index
    %27 = vector.load %arg10[%c0_24, %c0_25] : memref<1x16xf32, #tpu.memory_space<vmem>>, vector<1x16xf32>
    %28 = vector.broadcast %27 : vector<1x16xf32> to vector<2x16xf32>
    %29 = arith.addf %26, %28 : vector<2x16xf32>
    %30 = vector.extract_strided_slice %23 {offsets = [0, 0], sizes = [2, 32], strides = [1, 1]} : vector<4x64xf32> to vector<2x32xf32>
    %31 = arith.truncf %30 : vector<2x32xf32> to vector<2x32xbf16>
    %c0_26 = arith.constant 0 : index
    %c0_27 = arith.constant 0 : index
    %32 = vector.load %arg11[%c0_26, %c0_27] : memref<32x64xbf16, #tpu.memory_space<vmem>>, vector<32x64xbf16>
    %cst_28 = arith.constant dense<0.000000e+00> : vector<2x64xf32>
    %33 = tpu.matmul %31, %32, %cst_28 {dimension_numbers = #tpu.dot_dimension_numbers<[1], [0], [0], [1], [0, 0, 1, 1], [], []>} : vector<2x32xbf16>, vector<32x64xbf16>, vector<2x64xf32> -> vector<2x64xf32>
    %c0_29 = arith.constant 0 : index
    %c0_30 = arith.constant 0 : index
    %34 = vector.load %arg13[%c0_29, %c0_30] : memref<1x64xf32, #tpu.memory_space<vmem>>, vector<1x64xf32>
    %35 = vector.broadcast %34 : vector<1x64xf32> to vector<2x64xf32>
    %36 = arith.addf %33, %35 : vector<2x64xf32>
    %37 = arith.truncf %29 : vector<2x16xf32> to vector<2x16xbf16>
    %c0_31 = arith.constant 0 : index
    %c0_32 = arith.constant 0 : index
    %38 = vector.load %arg12[%c0_31, %c0_32] : memref<16x64xbf16, #tpu.memory_space<vmem>>, vector<16x64xbf16>
    %cst_33 = arith.constant dense<0.000000e+00> : vector<2x64xf32>
    %39 = tpu.matmul %37, %38, %cst_33 {dimension_numbers = #tpu.dot_dimension_numbers<[1], [0], [0], [1], [0, 0, 1, 1], [], []>} : vector<2x16xbf16>, vector<16x64xbf16>, vector<2x64xf32> -> vector<2x64xf32>
    %40 = arith.addf %36, %39 : vector<2x64xf32>
    %cst_34 = arith.constant 5.000000e-01 : f32
    %41 = vector.broadcast %cst_34 : f32 to vector<2x64xf32>
    %42 = arith.mulf %41, %40 : vector<2x64xf32>
    %cst_35 = arith.constant 0.707106769 : f32
    %43 = vector.broadcast %cst_35 : f32 to vector<2x64xf32>
    %44 = arith.mulf %40, %43 : vector<2x64xf32>
    %45 = math.absf %44 : vector<2x64xf32>
    %cst_36 = arith.constant 0.327591091 : f32
    %46 = vector.broadcast %cst_36 : f32 to vector<2x64xf32>
    %47 = arith.mulf %46, %45 : vector<2x64xf32>
    %cst_37 = arith.constant 1.000000e+00 : f32
    %48 = vector.broadcast %cst_37 : f32 to vector<2x64xf32>
    %49 = arith.addf %48, %47 : vector<2x64xf32>
    %50 = tpu.reciprocal %49 {approx = true} : vector<2x64xf32> -> vector<2x64xf32>
    %cst_38 = arith.constant 1.06140542 : f32
    %51 = vector.broadcast %cst_38 : f32 to vector<2x64xf32>
    %52 = arith.mulf %51, %50 : vector<2x64xf32>
    %cst_39 = arith.constant 1.45315206 : f32
    %53 = vector.broadcast %cst_39 : f32 to vector<2x64xf32>
    %54 = arith.subf %52, %53 : vector<2x64xf32>
    %55 = arith.mulf %54, %50 : vector<2x64xf32>
    %cst_40 = arith.constant 1.42141378 : f32
    %56 = vector.broadcast %cst_40 : f32 to vector<2x64xf32>
    %57 = arith.addf %55, %56 : vector<2x64xf32>
    %58 = arith.mulf %57, %50 : vector<2x64xf32>
    %cst_41 = arith.constant 0.284496725 : f32
    %59 = vector.broadcast %cst_41 : f32 to vector<2x64xf32>
    %60 = arith.subf %58, %59 : vector<2x64xf32>
    %61 = arith.mulf %60, %50 : vector<2x64xf32>
    %cst_42 = arith.constant 0.254829586 : f32
    %62 = vector.broadcast %cst_42 : f32 to vector<2x64xf32>
    %63 = arith.addf %61, %62 : vector<2x64xf32>
    %64 = arith.mulf %63, %50 : vector<2x64xf32>
    %cst_43 = arith.constant 0.000000e+00 : f32
    %65 = vector.broadcast %cst_43 : f32 to vector<2x64xf32>
    %66 = arith.subf %65, %45 : vector<2x64xf32>
    %67 = arith.mulf %66, %45 : vector<2x64xf32>
    %68 = math.exp %67 : vector<2x64xf32>
    %69 = arith.mulf %64, %68 : vector<2x64xf32>
    %cst_44 = arith.constant 1.000000e+00 : f32
    %70 = vector.broadcast %cst_44 : f32 to vector<2x64xf32>
    %71 = arith.subf %70, %69 : vector<2x64xf32>
    %cst_45 = arith.constant 0.000000e+00 : f32
    %72 = vector.broadcast %cst_45 : f32 to vector<2x64xf32>
    %73 = arith.cmpf olt, %44, %72 : vector<2x64xf32>
    %cst_46 = arith.constant 0.000000e+00 : f32
    %74 = vector.broadcast %cst_46 : f32 to vector<2x64xf32>
    %75 = arith.subf %74, %71 : vector<2x64xf32>
    %76 = arith.select %73, %75, %71 : vector<2x64xi1>, vector<2x64xf32>
    %cst_47 = arith.constant 1.000000e+00 : f32
    %77 = vector.broadcast %cst_47 : f32 to vector<2x64xf32>
    %78 = arith.addf %77, %76 : vector<2x64xf32>
    %79 = arith.mulf %42, %78 : vector<2x64xf32>
    %80 = arith.truncf %79 : vector<2x64xf32> to vector<2x64xbf16>
    %c0_48 = arith.constant 0 : index
    %c0_49 = arith.constant 0 : index
    %81 = vector.load %arg14[%c0_48, %c0_49] : memref<64x64xbf16, #tpu.memory_space<vmem>>, vector<64x64xbf16>
    %cst_50 = arith.constant dense<0.000000e+00> : vector<2x64xf32>
    %82 = tpu.matmul %80, %81, %cst_50 {dimension_numbers = #tpu.dot_dimension_numbers<[1], [0], [0], [1], [0, 0, 1, 1], [], []>} : vector<2x64xbf16>, vector<64x64xbf16>, vector<2x64xf32> -> vector<2x64xf32>
    %c0_51 = arith.constant 0 : index
    %c0_52 = arith.constant 0 : index
    %83 = vector.load %arg15[%c0_51, %c0_52] : memref<1x64xf32, #tpu.memory_space<vmem>>, vector<1x64xf32>
    %84 = vector.broadcast %83 : vector<1x64xf32> to vector<2x64xf32>
    %85 = arith.addf %82, %84 : vector<2x64xf32>
    %cst_53 = arith.constant 5.000000e-01 : f32
    %86 = vector.broadcast %cst_53 : f32 to vector<2x64xf32>
    %87 = arith.mulf %86, %85 : vector<2x64xf32>
    %cst_54 = arith.constant 0.707106769 : f32
    %88 = vector.broadcast %cst_54 : f32 to vector<2x64xf32>
    %89 = arith.mulf %85, %88 : vector<2x64xf32>
    %90 = math.absf %89 : vector<2x64xf32>
    %cst_55 = arith.constant 0.327591091 : f32
    %91 = vector.broadcast %cst_55 : f32 to vector<2x64xf32>
    %92 = arith.mulf %91, %90 : vector<2x64xf32>
    %cst_56 = arith.constant 1.000000e+00 : f32
    %93 = vector.broadcast %cst_56 : f32 to vector<2x64xf32>
    %94 = arith.addf %93, %92 : vector<2x64xf32>
    %95 = tpu.reciprocal %94 {approx = true} : vector<2x64xf32> -> vector<2x64xf32>
    %cst_57 = arith.constant 1.06140542 : f32
    %96 = vector.broadcast %cst_57 : f32 to vector<2x64xf32>
    %97 = arith.mulf %96, %95 : vector<2x64xf32>
    %cst_58 = arith.constant 1.45315206 : f32
    %98 = vector.broadcast %cst_58 : f32 to vector<2x64xf32>
    %99 = arith.subf %97, %98 : vector<2x64xf32>
    %100 = arith.mulf %99, %95 : vector<2x64xf32>
    %cst_59 = arith.constant 1.42141378 : f32
    %101 = vector.broadcast %cst_59 : f32 to vector<2x64xf32>
    %102 = arith.addf %100, %101 : vector<2x64xf32>
    %103 = arith.mulf %102, %95 : vector<2x64xf32>
    %cst_60 = arith.constant 0.284496725 : f32
    %104 = vector.broadcast %cst_60 : f32 to vector<2x64xf32>
    %105 = arith.subf %103, %104 : vector<2x64xf32>
    %106 = arith.mulf %105, %95 : vector<2x64xf32>
    %cst_61 = arith.constant 0.254829586 : f32
    %107 = vector.broadcast %cst_61 : f32 to vector<2x64xf32>
    %108 = arith.addf %106, %107 : vector<2x64xf32>
    %109 = arith.mulf %108, %95 : vector<2x64xf32>
    %cst_62 = arith.constant 0.000000e+00 : f32
    %110 = vector.broadcast %cst_62 : f32 to vector<2x64xf32>
    %111 = arith.subf %110, %90 : vector<2x64xf32>
    %112 = arith.mulf %111, %90 : vector<2x64xf32>
    %113 = math.exp %112 : vector<2x64xf32>
    %114 = arith.mulf %109, %113 : vector<2x64xf32>
    %cst_63 = arith.constant 1.000000e+00 : f32
    %115 = vector.broadcast %cst_63 : f32 to vector<2x64xf32>
    %116 = arith.subf %115, %114 : vector<2x64xf32>
    %cst_64 = arith.constant 0.000000e+00 : f32
    %117 = vector.broadcast %cst_64 : f32 to vector<2x64xf32>
    %118 = arith.cmpf olt, %89, %117 : vector<2x64xf32>
    %cst_65 = arith.constant 0.000000e+00 : f32
    %119 = vector.broadcast %cst_65 : f32 to vector<2x64xf32>
    %120 = arith.subf %119, %116 : vector<2x64xf32>
    %121 = arith.select %118, %120, %116 : vector<2x64xi1>, vector<2x64xf32>
    %cst_66 = arith.constant 1.000000e+00 : f32
    %122 = vector.broadcast %cst_66 : f32 to vector<2x64xf32>
    %123 = arith.addf %122, %121 : vector<2x64xf32>
    %124 = arith.mulf %87, %123 : vector<2x64xf32>
    %125 = arith.truncf %124 : vector<2x64xf32> to vector<2x64xbf16>
    %c0_67 = arith.constant 0 : index
    %c0_68 = arith.constant 0 : index
    %126 = vector.load %arg16[%c0_67, %c0_68] : memref<64x32xbf16, #tpu.memory_space<vmem>>, vector<64x32xbf16>
    %cst_69 = arith.constant dense<0.000000e+00> : vector<2x32xf32>
    %127 = tpu.matmul %125, %126, %cst_69 {dimension_numbers = #tpu.dot_dimension_numbers<[1], [0], [0], [1], [0, 0, 1, 1], [], []>} : vector<2x64xbf16>, vector<64x32xbf16>, vector<2x32xf32> -> vector<2x32xf32>
    %c0_70 = arith.constant 0 : index
    %c0_71 = arith.constant 0 : index
    %128 = vector.load %arg17[%c0_70, %c0_71] : memref<1x32xf32, #tpu.memory_space<vmem>>, vector<1x32xf32>
    %129 = vector.broadcast %128 : vector<1x32xf32> to vector<2x32xf32>
    %130 = arith.addf %127, %129 : vector<2x32xf32>
    %cst_72 = arith.constant 0.000000e+00 : f32
    %131 = vector.broadcast %cst_72 : f32 to vector<2x32xf32>
    %132 = tpu.concatenate %130, %131 in 0 : vector<2x32xf32>, vector<2x32xf32> -> vector<4x32xf32>
    %cst_73 = arith.constant 0.000000e+00 : f32
    %133 = vector.broadcast %cst_73 : f32 to vector<4x32xf32>
    %134 = tpu.concatenate %23, %132, %133 in 1 : vector<4x64xf32>, vector<4x32xf32>, vector<4x32xf32> -> vector<4x128xf32>
    %c0_74 = arith.constant 0 : index
    %c0_75 = arith.constant 0 : index
    %135 = vector.load %arg18[%c0_74, %c0_75] : memref<4x128xf32, #tpu.memory_space<vmem>>, vector<4x128xf32>
    tpu.vector_store %arg18[%c0_74, %c0_75], %134 {strides = array<i32>} : memref<4x128xf32, #tpu.memory_space<vmem>>, vector<4x128xf32>,
    return
  }
}

</mosaic_0001>

<llo_original>
// kernel: jepa_forward.1
$region0: #{jepa_forward.1}
  #allocation0 [shape = 'u32[]', space=smem, size = 0x4, offset = 0x4, fixed_abs, tag = 'smem constant byte address 0x4 - core index']
  #allocation1 [shape = 'u32[144,128]{1,0:T(1,128)}', space=vmem, size = 0x12000, scoped, tag = 'internal scratch']
  %s0 = inlined_call_operand.vmem [shape: bf16[2,1024], index: 0, kind: input, shape index: {}]
  %s1 = inlined_call_operand.vmem [shape: bf16[2,1024], index: 1, kind: input, shape index: {}]
  %s2 = inlined_call_operand.vmem [shape: bf16[2,8], index: 2, kind: input, shape index: {}]
  %s3 = inlined_call_operand.vmem [shape: bf16[1024,64], index: 3, kind: input, shape index: {}]
  %s4 = inlined_call_operand.vmem [shape: f32[1,64], index: 4, kind: input, shape index: {}]
  %s5 = inlined_call_operand.vmem [shape: bf16[64,64], index: 5, kind: input, shape index: {}]
  %s6 = inlined_call_operand.vmem [shape: f32[1,64], index: 6, kind: input, shape index: {}]
  %s7 = inlined_call_operand.vmem [shape: bf16[64,64], index: 7, kind: input, shape index: {}]
  %s8 = inlined_call_operand.vmem [shape: f32[1,64], index: 8, kind: input, shape index: {}]
  %s9 = inlined_call_operand.vmem [shape: bf16[8,16], index: 9, kind: input, shape index: {}]
  %s10 = inlined_call_operand.vmem [shape: f32[1,16], index: 10, kind: input, shape index: {}]
  %s11 = inlined_call_operand.vmem [shape: bf16[32,64], index: 11, kind: input, shape index: {}]
  %s12 = inlined_call_operand.vmem [shape: bf16[16,64], index: 12, kind: input, shape index: {}]
  %s13 = inlined_call_operand.vmem [shape: f32[1,64], index: 13, kind: input, shape index: {}]
  %s14 = inlined_call_operand.vmem [shape: bf16[64,64], index: 14, kind: input, shape index: {}]
  %s15 = inlined_call_operand.vmem [shape: f32[1,64], index: 15, kind: input, shape index: {}]
  %s16 = inlined_call_operand.vmem [shape: bf16[64,32], index: 16, kind: input, shape index: {}]
  %s17 = inlined_call_operand.vmem [shape: f32[1,32], index: 17, kind: input, shape index: {}]
  %s18 = inlined_call_operand.vmem [shape: f32[4,128], index: 18, kind: output, shape index: {}]
  %s19 = sld [smem:[#allocation0]]
  $region82: #{jepa_forward.1} parent=0
    _
  %s21 = ssub.s32 1, %s19
  %s22 = scalar_select 0, %s21, %s19
  // Predicated region
  $region2: #{jepa_forward.1} parent=0 // pred_check
    _
  $region3: #{jepa_forward.1} parent=0 // pred_check_branch
    %24 = sbr.rel (0) target = $region5
  $region4: #{jepa_forward.1} parent=0 // pred_region
    _
  $region5: #{jepa_forward.1} parent=0 // pred_fallthru
    _
  // Predicated region
  $region6: #{jepa_forward.1} parent=0 // pred_check
    _
  $region7: #{jepa_forward.1} parent=0 // pred_check_branch
    %26 = sbr.rel (0) target = $region9
  $region8: #{jepa_forward.1} parent=0 // pred_region
    _
  $region9: #{jepa_forward.1} parent=0 // pred_fallthru
    _
  // Predicated region
  $region10: #{jepa_forward.1} parent=0 // pred_check
    _
  $region11: #{jepa_forward.1} parent=0 // pred_check_branch
    %28 = sbr.rel (0) target = $region13
  $region12: #{jepa_forward.1} parent=0 // pred_region
    _
  $region13: #{jepa_forward.1} parent=0 // pred_fallthru
    _
  // Predicated region
  $region14: #{jepa_forward.1} parent=0 // pred_check
    _
  $region15: #{jepa_forward.1} parent=0 // pred_check_branch
    %30 = sbr.rel (0) target = $region17
  $region16: #{jepa_forward.1} parent=0 // pred_region
    _
  $region17: #{jepa_forward.1} parent=0 // pred_fallthru
    _
  // Predicated region
  $region18: #{jepa_forward.1} parent=0 // pred_check
    _
  $region19: #{jepa_forward.1} parent=0 // pred_check_branch
    %32 = sbr.rel (0) target = $region21
  $region20: #{jepa_forward.1} parent=0 // pred_region
    _
  $region21: #{jepa_forward.1} parent=0 // pred_fallthru
    _
  // Predicated region
  $region22: #{jepa_forward.1} parent=0 // pred_check
    _
  $region23: #{jepa_forward.1} parent=0 // pred_check_branch
    %34 = sbr.rel (0) target = $region25
  $region24: #{jepa_forward.1} parent=0 // pred_region
    _
  $region25: #{jepa_forward.1} parent=0 // pred_fallthru
    _
  // Predicated region
  $region26: #{jepa_forward.1} parent=0 // pred_check
    _
  $region27: #{jepa_forward.1} parent=0 // pred_check_branch
    %36 = sbr.rel (0) target = $region29
  $region28: #{jepa_forward.1} parent=0 // pred_region
    _
  $region29: #{jepa_forward.1} parent=0 // pred_fallthru
    _
  // Predicated region
  $region30: #{jepa_forward.1} parent=0 // pred_check
    _
  $region31: #{jepa_forward.1} parent=0 // pred_check_branch
    %38 = sbr.rel (0) target = $region33
  $region32: #{jepa_forward.1} parent=0 // pred_region
    _
  $region33: #{jepa_forward.1} parent=0 // pred_fallthru
    _
  // Predicated region
  $region34: #{jepa_forward.1} parent=0 // pred_check
    _
  $region35: #{jepa_forward.1} parent=0 // pred_check_branch
    %40 = sbr.rel (0) target = $region37
  $region36: #{jepa_forward.1} parent=0 // pred_region
    _
  $region37: #{jepa_forward.1} parent=0 // pred_fallthru
    _
  // Predicated region
  $region38: #{jepa_forward.1} parent=0 // pred_check
    _
  $region39: #{jepa_forward.1} parent=0 // pred_check_branch
    %42 = sbr.rel (0) target = $region41
  $region40: #{jepa_forward.1} parent=0 // pred_region
    _
  $region41: #{jepa_forward.1} parent=0 // pred_fallthru
    _
  // Predicated region
  $region42: #{jepa_forward.1} parent=0 // pred_check
    _
  $region43: #{jepa_forward.1} parent=0 // pred_check_branch
    %44 = sbr.rel (0) target = $region45
  $region44: #{jepa_forward.1} parent=0 // pred_region
    _
  $region45: #{jepa_forward.1} parent=0 // pred_fallthru
    _
  // Predicated region
  $region46: #{jepa_forward.1} parent=0 // pred_check
    _
  $region47: #{jepa_forward.1} parent=0 // pred_check_branch
    %46 = sbr.rel (0) target = $region49
  $region48: #{jepa_forward.1} parent=0 // pred_region
    _
  $region49: #{jepa_forward.1} parent=0 // pred_fallthru
    _
  // Predicated region
  $region50: #{jepa_forward.1} parent=0 // pred_check
    _
  $region51: #{jepa_forward.1} parent=0 // pred_check_branch
    %48 = sbr.rel (0) target = $region53
  $region52: #{jepa_forward.1} parent=0 // pred_region
    _
  $region53: #{jepa_forward.1} parent=0 // pred_fallthru
    _
  // Predicated region
  $region54: #{jepa_forward.1} parent=0 // pred_check
    _
  $region55: #{jepa_forward.1} parent=0 // pred_check_branch
    %50 = sbr.rel (0) target = $region57
  $region56: #{jepa_forward.1} parent=0 // pred_region
    _
  $region57: #{jepa_forward.1} parent=0 // pred_fallthru
    _
  // Predicated region
  $region58: #{jepa_forward.1} parent=0 // pred_check
    _
  $region59: #{jepa_forward.1} parent=0 // pred_check_branch
    %52 = sbr.rel (0) target = $region61
  $region60: #{jepa_forward.1} parent=0 // pred_region
    _
  $region61: #{jepa_forward.1} parent=0 // pred_fallthru
    _
  // Predicated region
  $region62: #{jepa_forward.1} parent=0 // pred_check
    _
  $region63: #{jepa_forward.1} parent=0 // pred_check_branch
    %54 = sbr.rel (0) target = $region65
  $region64: #{jepa_forward.1} parent=0 // pred_region
    _
  $region65: #{jepa_forward.1} parent=0 // pred_fallthru
    _
  // Predicated region
  $region66: #{jepa_forward.1} parent=0 // pred_check
    _
  $region67: #{jepa_forward.1} parent=0 // pred_check_branch
    %56 = sbr.rel (0) target = $region69
  $region68: #{jepa_forward.1} parent=0 // pred_region
    _
  $region69: #{jepa_forward.1} parent=0 // pred_fallthru
    _
  // Predicated region
  $region70: #{jepa_forward.1} parent=0 // pred_check
    _
  $region71: #{jepa_forward.1} parent=0 // pred_check_branch
    %58 = sbr.rel (0) target = $region73
  $region72: #{jepa_forward.1} parent=0 // pred_region
    _
  $region73: #{jepa_forward.1} parent=0 // pred_fallthru
    _
  %v60 = vld [vmem:[%s0] sm:$0xff]
  %v61 = vld [vmem:[%s1] sm:$0xff]
  %v63 = vcombine.high %v60, %v60
  %v65 = vunpack.c.l.s4 1966171168
  %v66 = vunpack.c.0.s8 %v65
  %v67 = vlaneseq
  %v68 = vshrl.u32 %v67, 7
  %v69 = vsub.s32 %v66, %v68
  %v70 = vrot.slane %v60, %v69
  %v72 = vunpack.c.l.s4 1966171168
  %v73 = vunpack.c.0.s8 %v72
  %v74 = vlaneseq
  %v75 = vshrl.u32 %v74, 7
  %v76 = vsub.s32 %v73, %v75
  %v77 = vrot.slane %v63, %v76
  %v78 = vcombine.high %v70, %v70
  %v79 = vcombine.high %v77, %v77
  %v81 = vunpack.c.l.s4 1966171168
  %v82 = vunpack.c.0.s8 %v81
  %v83 = vlaneseq
  %v84 = vshrl.u32 %v83, 7
  %v85 = vsub.s32 %v82, %v84
  %v86 = vrot.slane %v70, %v85
  %v88 = vunpack.c.l.s4 1966171168
  %v89 = vunpack.c.0.s8 %v88
  %v90 = vlaneseq
  %v91 = vshrl.u32 %v90, 7
  %v92 = vsub.s32 %v89, %v91
  %v93 = vrot.slane %v77, %v92
  %v95 = vunpack.c.l.s4 1966171168
  %v96 = vunpack.c.0.s8 %v95
  %v97 = vlaneseq
  %v98 = vshrl.u32 %v97, 7
  %v99 = vsub.s32 %v96, %v98
  %v100 = vrot.slane %v78, %v99
  %v102 = vunpack.c.l.s4 1966171168
  %v103 = vunpack.c.0.s8 %v102
  %v104 = vlaneseq
  %v105 = vshrl.u32 %v104, 7
  %v106 = vsub.s32 %v103, %v105
  %v107 = vrot.slane %v79, %v106
  %v108 = vcombine.high %v86, %v86
  %v109 = vcombine.high %v93, %v93
  %v110 = vcombine.high %v100, %v100
  %v111 = vcombine.high %v107, %v107
  %v113 = vcombine.low %v61, %v61
  %v115 = vunpack.c.l.s4 1966171168
  %v116 = vunpack.c.0.s8 %v115
  %v117 = vlaneseq
  %v118 = vshrl.u32 %v117, 7
  %v119 = vsub.s32 %v116, %v118
  %v120 = vrot.slane %v113, %v119
  %v122 = vunpack.c.l.s4 1966171168
  %v123 = vunpack.c.0.s8 %v122
  %v124 = vlaneseq
  %v125 = vshrl.u32 %v124, 7
  %v126 = vsub.s32 %v123, %v125
  %v127 = vrot.slane %v61, %v126
  %v128 = vcombine.high %v120, %v120
  %v129 = vcombine.high %v127, %v127
  %v131 = vunpack.c.l.s4 1966171168
  %v132 = vunpack.c.0.s8 %v131
  %v133 = vlaneseq
  %v134 = vshrl.u32 %v133, 7
  %v135 = vsub.s32 %v132, %v134
  %v136 = vrot.slane %v120, %v135
  %v138 = vunpack.c.l.s4 1966171168
  %v139 = vunpack.c.0.s8 %v138
  %v140 = vlaneseq
  %v141 = vshrl.u32 %v140, 7
  %v142 = vsub.s32 %v139, %v141
  %v143 = vrot.slane %v127, %v142
  %v145 = vunpack.c.l.s4 1966171168
  %v146 = vunpack.c.0.s8 %v145
  %v147 = vlaneseq
  %v148 = vshrl.u32 %v147, 7
  %v149 = vsub.s32 %v146, %v148
  %v150 = vrot.slane %v128, %v149
  %v152 = vunpack.c.l.s4 1966171168
  %v153 = vunpack.c.0.s8 %v152
  %v154 = vlaneseq
  %v155 = vshrl.u32 %v154, 7
  %v156 = vsub.s32 %v153, %v155
  %v157 = vrot.slane %v129, %v156
  %v158 = vcombine.high %v136, %v136
  %v159 = vcombine.high %v143, %v143
  %v160 = vcombine.high %v150, %v150
  %v161 = vcombine.high %v157, %v157
  %vm162 = vcmask 1040384
  %v165 = vsel %vm162, %v86, %v136
  %v169 = vsel %vm162, %v100, %v150
  %v173 = vsel %vm162, %v108, %v158
  %v177 = vsel %vm162, %v110, %v160
  %v181 = vsel %vm162, %v93, %v143
  %v185 = vsel %vm162, %v107, %v157
  %v189 = vsel %vm162, %v109, %v159
  %v193 = vsel %vm162, %v111, %v161
  %v195 = vld [vmem:[%s3] sm:$0xf]
  %v196 = vld [vmem:[%s3 + $0x4] sm:$0xf]
  %v197 = vld [vmem:[%s3 + $0x8] sm:$0xf]
  %v198 = vld [vmem:[%s3 + $0xc] sm:$0xf]
  %v199 = vld [vmem:[%s3 + $0x10] sm:$0xf]
  %v200 = vld [vmem:[%s3 + $0x14] sm:$0xf]
  %v201 = vld [vmem:[%s3 + $0x18] sm:$0xf]
  %v202 = vld [vmem:[%s3 + $0x1c] sm:$0xf]
  %v203 = vld [vmem:[%s3 + $0x20] sm:$0xf]
  %v204 = vld [vmem:[%s3 + $0x24] sm:$0xf]
  %v205 = vld [vmem:[%s3 + $0x28] sm:$0xf]
  %v206 = vld [vmem:[%s3 + $0x2c] sm:$0xf]
  %v207 = vld [vmem:[%s3 + $0x30] sm:$0xf]
  %v208 = vld [vmem:[%s3 + $0x34] sm:$0xf]
  %v209 = vld [vmem:[%s3 + $0x38] sm:$0xf]
  %v210 = vld [vmem:[%s3 + $0x3c] sm:$0xf]
  %v211 = vld [vmem:[%s3 + $0x40] sm:$0xf]
  %v212 = vld [vmem:[%s3 + $0x44] sm:$0xf]
  %v213 = vld [vmem:[%s3 + $0x48] sm:$0xf]
  %v214 = vld [vmem:[%s3 + $0x4c] sm:$0xf]
  %v215 = vld [vmem:[%s3 + $0x50] sm:$0xf]
  %v216 = vld [vmem:[%s3 + $0x54] sm:$0xf]
  %v217 = vld [vmem:[%s3 + $0x58] sm:$0xf]
  %v218 = vld [vmem:[%s3 + $0x5c] sm:$0xf]
  %v219 = vld [vmem:[%s3 + $0x60] sm:$0xf]
  %v220 = vld [vmem:[%s3 + $0x64] sm:$0xf]
  %v221 = vld [vmem:[%s3 + $0x68] sm:$0xf]
  %v222 = vld [vmem:[%s3 + $0x6c] sm:$0xf]
  %v223 = vld [vmem:[%s3 + $0x70] sm:$0xf]
  %v224 = vld [vmem:[%s3 + $0x74] sm:$0xf]
  %v225 = vld [vmem:[%s3 + $0x78] sm:$0xf]
  %v226 = vld [vmem:[%s3 + $0x7c] sm:$0xf]
  %v227 = vld [vmem:[%s3 + $0x80] sm:$0xf]
  %v228 = vld [vmem:[%s3 + $0x84] sm:$0xf]
  %v229 = vld [vmem:[%s3 + $0x88] sm:$0xf]
  %v230 = vld [vmem:[%s3 + $0x8c] sm:$0xf]
  %v231 = vld [vmem:[%s3 + $0x90] sm:$0xf]
  %v232 = vld [vmem:[%s3 + $0x94] sm:$0xf]
  %v233 = vld [vmem:[%s3 + $0x98] sm:$0xf]
  %v234 = vld [vmem:[%s3 + $0x9c] sm:$0xf]
  %v235 = vld [vmem:[%s3 + $0xa0] sm:$0xf]
  %v236 = vld [vmem:[%s3 + $0xa4] sm:$0xf]
  %v237 = vld [vmem:[%s3 + $0xa8] sm:$0xf]
  %v238 = vld [vmem:[%s3 + $0xac] sm:$0xf]
  %v239 = vld [vmem:[%s3 + $0xb0] sm:$0xf]
  %v240 = vld [vmem:[%s3 + $0xb4] sm:$0xf]
  %v241 = vld [vmem:[%s3 + $0xb8] sm:$0xf]
  %v242 = vld [vmem:[%s3 + $0xbc] sm:$0xf]
  %v243 = vld [vmem:[%s3 + $0xc0] sm:$0xf]
  %v244 = vld [vmem:[%s3 + $0xc4] sm:$0xf]
  %v245 = vld [vmem:[%s3 + $0xc8] sm:$0xf]
  %v246 = vld [vmem:[%s3 + $0xcc] sm:$0xf]
  %v247 = vld [vmem:[%s3 + $0xd0] sm:$0xf]
  %v248 = vld [vmem:[%s3 + $0xd4] sm:$0xf]
  %v249 = vld [vmem:[%s3 + $0xd8] sm:$0xf]
  %v250 = vld [vmem:[%s3 + $0xdc] sm:$0xf]
  %v251 = vld [vmem:[%s3 + $0xe0] sm:$0xf]
  %v252 = vld [vmem:[%s3 + $0xe4] sm:$0xf]
  %v253 = vld [vmem:[%s3 + $0xe8] sm:$0xf]
  %v254 = vld [vmem:[%s3 + $0xec] sm:$0xf]
  %v255 = vld [vmem:[%s3 + $0xf0] sm:$0xf]
  %v256 = vld [vmem:[%s3 + $0xf4] sm:$0xf]
  %v257 = vld [vmem:[%s3 + $0xf8] sm:$0xf]
  %v258 = vld [vmem:[%s3 + $0xfc] sm:$0xf]
  %v259 = vld [vmem:[%s3 + $0x100] sm:$0xf]
  %v260 = vld [vmem:[%s3 + $0x104] sm:$0xf]
  %v261 = vld [vmem:[%s3 + $0x108] sm:$0xf]
  %v262 = vld [vmem:[%s3 + $0x10c] sm:$0xf]
  %v263 = vld [vmem:[%s3 + $0x110] sm:$0xf]
  %v264 = vld [vmem:[%s3 + $0x114] sm:$0xf]
  %v265 = vld [vmem:[%s3 + $0x118] sm:$0xf]
  %v266 = vld [vmem:[%s3 + $0x11c] sm:$0xf]
  %v267 = vld [vmem:[%s3 + $0x120] sm:$0xf]
  %v268 = vld [vmem:[%s3 + $0x124] sm:$0xf]
  %v269 = vld [vmem:[%s3 + $0x128] sm:$0xf]
  %v270 = vld [vmem:[%s3 + $0x12c] sm:$0xf]
  %v271 = vld [vmem:[%s3 + $0x130] sm:$0xf]
  %v272 = vld [vmem:[%s3 + $0x134] sm:$0xf]
  %v273 = vld [vmem:[%s3 + $0x138] sm:$0xf]
  %v274 = vld [vmem:[%s3 + $0x13c] sm:$0xf]
  %v275 = vld [vmem:[%s3 + $0x140] sm:$0xf]
  %v276 = vld [vmem:[%s3 + $0x144] sm:$0xf]
  %v277 = vld [vmem:[%s3 + $0x148] sm:$0xf]
  %v278 = vld [vmem:[%s3 + $0x14c] sm:$0xf]
  %v279 = vld [vmem:[%s3 + $0x150] sm:$0xf]
  %v280 = vld [vmem:[%s3 + $0x154] sm:$0xf]
  %v281 = vld [vmem:[%s3 + $0x158] sm:$0xf]
  %v282 = vld [vmem:[%s3 + $0x15c] sm:$0xf]
  %v283 = vld [vmem:[%s3 + $0x160] sm:$0xf]
  %v284 = vld [vmem:[%s3 + $0x164] sm:$0xf]
  %v285 = vld [vmem:[%s3 + $0x168] sm:$0xf]
  %v286 = vld [vmem:[%s3 + $0x16c] sm:$0xf]
  %v287 = vld [vmem:[%s3 + $0x170] sm:$0xf]
  %v288 = vld [vmem:[%s3 + $0x174] sm:$0xf]
  %v289 = vld [vmem:[%s3 + $0x178] sm:$0xf]
  %v290 = vld [vmem:[%s3 + $0x17c] sm:$0xf]
  %v291 = vld [vmem:[%s3 + $0x180] sm:$0xf]
  %v292 = vld [vmem:[%s3 + $0x184] sm:$0xf]
  %v293 = vld [vmem:[%s3 + $0x188] sm:$0xf]
  %v294 = vld [vmem:[%s3 + $0x18c] sm:$0xf]
  %v295 = vld [vmem:[%s3 + $0x190] sm:$0xf]
  %v296 = vld [vmem:[%s3 + $0x194] sm:$0xf]
  %v297 = vld [vmem:[%s3 + $0x198] sm:$0xf]
  %v298 = vld [vmem:[%s3 + $0x19c] sm:$0xf]
  %v299 = vld [vmem:[%s3 + $0x1a0] sm:$0xf]
  %v300 = vld [vmem:[%s3 + $0x1a4] sm:$0xf]
  %v301 = vld [vmem:[%s3 + $0x1a8] sm:$0xf]
  %v302 = vld [vmem:[%s3 + $0x1ac] sm:$0xf]
  %v303 = vld [vmem:[%s3 + $0x1b0] sm:$0xf]
  %v304 = vld [vmem:[%s3 + $0x1b4] sm:$0xf]
  %v305 = vld [vmem:[%s3 + $0x1b8] sm:$0xf]
  %v306 = vld [vmem:[%s3 + $0x1bc] sm:$0xf]
  %v307 = vld [vmem:[%s3 + $0x1c0] sm:$0xf]
  %v308 = vld [vmem:[%s3 + $0x1c4] sm:$0xf]
  %v309 = vld [vmem:[%s3 + $0x1c8] sm:$0xf]
  %v310 = vld [vmem:[%s3 + $0x1cc] sm:$0xf]
  %v311 = vld [vmem:[%s3 + $0x1d0] sm:$0xf]
  %v312 = vld [vmem:[%s3 + $0x1d4] sm:$0xf]
  %v313 = vld [vmem:[%s3 + $0x1d8] sm:$0xf]
  %v314 = vld [vmem:[%s3 + $0x1dc] sm:$0xf]
  %v315 = vld [vmem:[%s3 + $0x1e0] sm:$0xf]
  %v316 = vld [vmem:[%s3 + $0x1e4] sm:$0xf]
  %v317 = vld [vmem:[%s3 + $0x1e8] sm:$0xf]
  %v318 = vld [vmem:[%s3 + $0x1ec] sm:$0xf]
  %v319 = vld [vmem:[%s3 + $0x1f0] sm:$0xf]
  %v320 = vld [vmem:[%s3 + $0x1f4] sm:$0xf]
  %v321 = vld [vmem:[%s3 + $0x1f8] sm:$0xf]
  %v322 = vld [vmem:[%s3 + $0x1fc] sm:$0xf]
  %v323 = vld [vmem:[%s4] sm:$0x1]
  %v325 = vlaneseq
  %v326 = vshrl.u32 %v325, 7
  %v327 = vsub.s32 0, %v326
  %v328 = vrot.slane %v323, %v327
  %v458 = vunpack.c.l.b16 %v195
  %v459 = vunpack.c.l.b16 %v196
  %v460 = vunpack.c.l.b16 %v197
  %v461 = vunpack.c.l.b16 %v198
  %v462 = vunpack.c.l.b16 %v199
  %v463 = vunpack.c.l.b16 %v200
  %v464 = vunpack.c.l.b16 %v201
  %v465 = vunpack.c.l.b16 %v202
  %v466 = vunpack.c.l.b16 %v203
  %v467 = vunpack.c.l.b16 %v204
  %v468 = vunpack.c.l.b16 %v205
  %v469 = vunpack.c.l.b16 %v206
  %v470 = vunpack.c.l.b16 %v207
  %v471 = vunpack.c.l.b16 %v208
  %v472 = vunpack.c.l.b16 %v209
  %v473 = vunpack.c.l.b16 %v210
  %v474 = vunpack.c.l.b16 %v211
  %v475 = vunpack.c.l.b16 %v212
  %v476 = vunpack.c.l.b16 %v213
  %v477 = vunpack.c.l.b16 %v214
  %v478 = vunpack.c.l.b16 %v215
  %v479 = vunpack.c.l.b16 %v216
  %v480 = vunpack.c.l.b16 %v217
  %v481 = vunpack.c.l.b16 %v218
  %v482 = vunpack.c.l.b16 %v219
  %v483 = vunpack.c.l.b16 %v220
  %v484 = vunpack.c.l.b16 %v221
  %v485 = vunpack.c.l.b16 %v222
  %v486 = vunpack.c.l.b16 %v223
  %v487 = vunpack.c.l.b16 %v224
  %v488 = vunpack.c.l.b16 %v225
  %v489 = vunpack.c.l.b16 %v226
  %v490 = vunpack.c.l.b16 %v227
  %v491 = vunpack.c.l.b16 %v228
  %v492 = vunpack.c.l.b16 %v229
  %v493 = vunpack.c.l.b16 %v230
  %v494 = vunpack.c.l.b16 %v231
  %v495 = vunpack.c.l.b16 %v232
  %v496 = vunpack.c.l.b16 %v233
  %v497 = vunpack.c.l.b16 %v234
  %v498 = vunpack.c.l.b16 %v235
  %v499 = vunpack.c.l.b16 %v236
  %v500 = vunpack.c.l.b16 %v237
  %v501 = vunpack.c.l.b16 %v238
  %v502 = vunpack.c.l.b16 %v239
  %v503 = vunpack.c.l.b16 %v240
  %v504 = vunpack.c.l.b16 %v241
  %v505 = vunpack.c.l.b16 %v242
  %v506 = vunpack.c.l.b16 %v243
  %v507 = vunpack.c.l.b16 %v244
  %v508 = vunpack.c.l.b16 %v245
  %v509 = vunpack.c.l.b16 %v246
  %v510 = vunpack.c.l.b16 %v247
  %v511 = vunpack.c.l.b16 %v248
  %v512 = vunpack.c.l.b16 %v249
  %v513 = vunpack.c.l.b16 %v250
  %v514 = vunpack.c.l.b16 %v251
  %v515 = vunpack.c.l.b16 %v252
  %v516 = vunpack.c.l.b16 %v253
  %v517 = vunpack.c.l.b16 %v254
  %v518 = vunpack.c.l.b16 %v255
  %v519 = vunpack.c.l.b16 %v256
  %v520 = vunpack.c.l.b16 %v257
  %v521 = vunpack.c.l.b16 %v258
  %v522 = vunpack.c.l.b16 %v259
  %v523 = vunpack.c.l.b16 %v260
  %v524 = vunpack.c.l.b16 %v261
  %v525 = vunpack.c.l.b16 %v262
  %v526 = vunpack.c.l.b16 %v263
  %v527 = vunpack.c.l.b16 %v264
  %v528 = vunpack.c.l.b16 %v265
  %v529 = vunpack.c.l.b16 %v266
  %v530 = vunpack.c.l.b16 %v267
  %v531 = vunpack.c.l.b16 %v268
  %v532 = vunpack.c.l.b16 %v269
  %v533 = vunpack.c.l.b16 %v270
  %v534 = vunpack.c.l.b16 %v271
  %v535 = vunpack.c.l.b16 %v272
  %v536 = vunpack.c.l.b16 %v273
  %v537 = vunpack.c.l.b16 %v274
  %v538 = vunpack.c.l.b16 %v275
  %v539 = vunpack.c.l.b16 %v276
  %v540 = vunpack.c.l.b16 %v277
  %v541 = vunpack.c.l.b16 %v278
  %v542 = vunpack.c.l.b16 %v279
  %v543 = vunpack.c.l.b16 %v280
  %v544 = vunpack.c.l.b16 %v281
  %v545 = vunpack.c.l.b16 %v282
  %v546 = vunpack.c.l.b16 %v283
  %v547 = vunpack.c.l.b16 %v284
  %v548 = vunpack.c.l.b16 %v285
  %v549 = vunpack.c.l.b16 %v286
  %v550 = vunpack.c.l.b16 %v287
  %v551 = vunpack.c.l.b16 %v288
  %v552 = vunpack.c.l.b16 %v289
  %v553 = vunpack.c.l.b16 %v290
  %v554 = vunpack.c.l.b16 %v291
  %v555 = vunpack.c.l.b16 %v292
  %v556 = vunpack.c.l.b16 %v293
  %v557 = vunpack.c.l.b16 %v294
  %v558 = vunpack.c.l.b16 %v295
  %v559 = vunpack.c.l.b16 %v296
  %v560 = vunpack.c.l.b16 %v297
  %v561 = vunpack.c.l.b16 %v298
  %v562 = vunpack.c.l.b16 %v299
  %v563 = vunpack.c.l.b16 %v300
  %v564 = vunpack.c.l.b16 %v301
  %v565 = vunpack.c.l.b16 %v302
  %v566 = vunpack.c.l.b16 %v303
  %v567 = vunpack.c.l.b16 %v304
  %v568 = vunpack.c.l.b16 %v305
  %v569 = vunpack.c.l.b16 %v306
  %v570 = vunpack.c.l.b16 %v307
  %v571 = vunpack.c.l.b16 %v308
  %v572 = vunpack.c.l.b16 %v309
  %v573 = vunpack.c.l.b16 %v310
  %v574 = vunpack.c.l.b16 %v311
  %v575 = vunpack.c.l.b16 %v312
  %v576 = vunpack.c.l.b16 %v313
  %v577 = vunpack.c.l.b16 %v314
  %v578 = vunpack.c.l.b16 %v315
  %v579 = vunpack.c.l.b16 %v316
  %v580 = vunpack.c.l.b16 %v317
  %v581 = vunpack.c.l.b16 %v318
  %v582 = vunpack.c.l.b16 %v319
  %v583 = vunpack.c.l.b16 %v320
  %v584 = vunpack.c.l.b16 %v321
  %v585 = vunpack.c.l.b16 %v322
  %v586 = vpack.c.b16 %v459, %v458
  %v587 = vpack.c.b16 %v461, %v460
  %v588 = vpack.c.b16 %v463, %v462
  %v589 = vpack.c.b16 %v465, %v464
  %v590 = vpack.c.b16 %v467, %v466
  %v591 = vpack.c.b16 %v469, %v468
  %v592 = vpack.c.b16 %v471, %v470
  %v593 = vpack.c.b16 %v473, %v472
  %v594 = vpack.c.b16 %v475, %v474
  %v595 = vpack.c.b16 %v477, %v476
  %v596 = vpack.c.b16 %v479, %v478
  %v597 = vpack.c.b16 %v481, %v480
  %v598 = vpack.c.b16 %v483, %v482
  %v599 = vpack.c.b16 %v485, %v484
  %v600 = vpack.c.b16 %v487, %v486
  %v601 = vpack.c.b16 %v489, %v488
  %v602 = vpack.c.b16 %v491, %v490
  %v603 = vpack.c.b16 %v493, %v492
  %v604 = vpack.c.b16 %v495, %v494
  %v605 = vpack.c.b16 %v497, %v496
  %v606 = vpack.c.b16 %v499, %v498
  %v607 = vpack.c.b16 %v501, %v500
  %v608 = vpack.c.b16 %v503, %v502
  %v609 = vpack.c.b16 %v505, %v504
  %v610 = vpack.c.b16 %v507, %v506
  %v611 = vpack.c.b16 %v509, %v508
  %v612 = vpack.c.b16 %v511, %v510
  %v613 = vpack.c.b16 %v513, %v512
  %v614 = vpack.c.b16 %v515, %v514
  %v615 = vpack.c.b16 %v517, %v516
  %v616 = vpack.c.b16 %v519, %v518
  %v617 = vpack.c.b16 %v521, %v520
  %v618 = vpack.c.b16 %v523, %v522
  %v619 = vpack.c.b16 %v525, %v524
  %v620 = vpack.c.b16 %v527, %v526
  %v621 = vpack.c.b16 %v529, %v528
  %v622 = vpack.c.b16 %v531, %v530
  %v623 = vpack.c.b16 %v533, %v532
  %v624 = vpack.c.b16 %v535, %v534
  %v625 = vpack.c.b16 %v537, %v536
  %v626 = vpack.c.b16 %v539, %v538
  %v627 = vpack.c.b16 %v541, %v540
  %v628 = vpack.c.b16 %v543, %v542
  %v629 = vpack.c.b16 %v545, %v544
  %v630 = vpack.c.b16 %v547, %v546
  %v631 = vpack.c.b16 %v549, %v548
  %v632 = vpack.c.b16 %v551, %v550
  %v633 = vpack.c.b16 %v553, %v552
  %v634 = vpack.c.b16 %v555, %v554
  %v635 = vpack.c.b16 %v557, %v556
  %v636 = vpack.c.b16 %v559, %v558
  %v637 = vpack.c.b16 %v561, %v560
  %v638 = vpack.c.b16 %v563, %v562
  %v639 = vpack.c.b16 %v565, %v564
  %v640 = vpack.c.b16 %v567, %v566
  %v641 = vpack.c.b16 %v569, %v568
  %v642 = vpack.c.b16 %v571, %v570
  %v643 = vpack.c.b16 %v573, %v572
  %v644 = vpack.c.b16 %v575, %v574
  %v645 = vpack.c.b16 %v577, %v576
  %v646 = vpack.c.b16 %v579, %v578
  %v647 = vpack.c.b16 %v581, %v580
  %v648 = vpack.c.b16 %v583, %v582
  %v649 = vpack.c.b16 %v585, %v584
  %714 = vmatprep.subr.bf16.mxu0 0
  %715 = vmatpush1.bf16.msra.mxu0 %v586
  %716 = vmatprep.subr.bf16.mxu0 0
  %717 = vmatpush1.bf16.msra.mxu0 %v587
  %718 = vmatprep.subr.bf16.mxu0 0
  %719 = vmatpush1.bf16.msra.mxu0 %v588
  %720 = vmatprep.subr.bf16.mxu0 0
  %721 = vmatpush1.bf16.msra.mxu0 %v589
  %722 = vmatprep.subr.bf16.mxu0 0
  %723 = vmatpush1.bf16.msra.mxu0 %v590
  %724 = vmatprep.subr.bf16.mxu0 0
  %725 = vmatpush1.bf16.msra.mxu0 %v591
  %726 = vmatprep.subr.bf16.mxu0 0
  %727 = vmatpush1.bf16.msra.mxu0 %v592
  %728 = vmatprep.subr.bf16.mxu0 0
  %729 = vmatpush1.bf16.msra.mxu0 %v593
  %730 = vmatprep.subr.bf16.mxu0 0
  %731 = vmatpush1.bf16.msra.mxu0 %v594
  %732 = vmatprep.subr.bf16.mxu0 0
  %733 = vmatpush1.bf16.msra.mxu0 %v595
  %734 = vmatprep.subr.bf16.mxu0 0
  %735 = vmatpush1.bf16.msra.mxu0 %v596
  %736 = vmatprep.subr.bf16.mxu0 0
  %737 = vmatpush1.bf16.msra.mxu0 %v597
  %738 = vmatprep.subr.bf16.mxu0 0
  %739 = vmatpush1.bf16.msra.mxu0 %v598
  %740 = vmatprep.subr.bf16.mxu0 0
  %741 = vmatpush1.bf16.msra.mxu0 %v599
  %742 = vmatprep.subr.bf16.mxu0 0
  %743 = vmatpush1.bf16.msra.mxu0 %v600
  %744 = vmatprep.subr.bf16.mxu0 0
  %745 = vmatpush1.bf16.msra.mxu0 %v601
  %746 = vmatprep.mubr.bf16.mxu0 %v169
  %747 = vmatmul.mubr.bf16.gmra.mrb[0].mxu0 %v165
  %v748 = vpop.f32.mrb[0].mxu0
  %v749 = vadd.f32 %v328, %v748
  %v750 = vpop.f32.mrb[0].mxu0
  %v751 = vpop.f32.mrb[0].mxu0
  %v752 = vpop.f32.mrb[0].mxu0
  %753 = vdwg.mxu0
  %754 = vmatprep.subr.bf16.mxu0 0
  %755 = vmatpush1.bf16.msra.mxu0 %v602
  %756 = vmatprep.subr.bf16.mxu0 0
  %757 = vmatpush1.bf16.msra.mxu0 %v603
  %758 = vmatprep.subr.bf16.mxu0 0
  %759 = vmatpush1.bf16.msra.mxu0 %v604
  %760 = vmatprep.subr.bf16.mxu0 0
  %761 = vmatpush1.bf16.msra.mxu0 %v605
  %762 = vmatprep.subr.bf16.mxu0 0
  %763 = vmatpush1.bf16.msra.mxu0 %v606
  %764 = vmatprep.subr.bf16.mxu0 0
  %765 = vmatpush1.bf16.msra.mxu0 %v607
  %766 = vmatprep.subr.bf16.mxu0 0
  %767 = vmatpush1.bf16.msra.mxu0 %v608
  %768 = vmatprep.subr.bf16.mxu0 0
  %769 = vmatpush1.bf16.msra.mxu0 %v609
  %770 = vmatprep.subr.bf16.mxu0 0
  %771 = vmatpush1.bf16.msra.mxu0 %v610
  %772 = vmatprep.subr.bf16.mxu0 0
  %773 = vmatpush1.bf16.msra.mxu0 %v611
  %774 = vmatprep.subr.bf16.mxu0 0
  %775 = vmatpush1.bf16.msra.mxu0 %v612
  %776 = vmatprep.subr.bf16.mxu0 0
  %777 = vmatpush1.bf16.msra.mxu0 %v613
  %778 = vmatprep.subr.bf16.mxu0 0
  %779 = vmatpush1.bf16.msra.mxu0 %v614
  %780 = vmatprep.subr.bf16.mxu0 0
  %781 = vmatpush1.bf16.msra.mxu0 %v615
  %782 = vmatprep.subr.bf16.mxu0 0
  %783 = vmatpush1.bf16.msra.mxu0 %v616
  %784 = vmatprep.subr.bf16.mxu0 0
  %785 = vmatpush1.bf16.msra.mxu0 %v617
  %786 = vmatprep.mubr.bf16.mxu0 %v177
  %787 = vmatmul.mubr.bf16.gmra.mrb[0].mxu0 %v173
  %v788 = vpop.f32.mrb[0].mxu0
  %v789 = vadd.f32 %v749, %v788
  %v790 = vpop.f32.mrb[0].mxu0
  %v791 = vpop.f32.mrb[0].mxu0
  %v792 = vpop.f32.mrb[0].mxu0
  %793 = vdwg.mxu0
  %794 = vmatprep.subr.bf16.mxu0 0
  %795 = vmatpush1.bf16.msra.mxu0 %v618
  %796 = vmatprep.subr.bf16.mxu0 0
  %797 = vmatpush1.bf16.msra.mxu0 %v619
  %798 = vmatprep.subr.bf16.mxu0 0
  %799 = vmatpush1.bf16.msra.mxu0 %v620
  %800 = vmatprep.subr.bf16.mxu0 0
  %801 = vmatpush1.bf16.msra.mxu0 %v621
  %802 = vmatprep.subr.bf16.mxu0 0
  %803 = vmatpush1.bf16.msra.mxu0 %v622
  %804 = vmatprep.subr.bf16.mxu0 0
  %805 = vmatpush1.bf16.msra.mxu0 %v623
  %806 = vmatprep.subr.bf16.mxu0 0
  %807 = vmatpush1.bf16.msra.mxu0 %v624
  %808 = vmatprep.subr.bf16.mxu0 0
  %809 = vmatpush1.bf16.msra.mxu0 %v625
  %810 = vmatprep.subr.bf16.mxu0 0
  %811 = vmatpush1.bf16.msra.mxu0 %v626
  %812 = vmatprep.subr.bf16.mxu0 0
  %813 = vmatpush1.bf16.msra.mxu0 %v627
  %814 = vmatprep.subr.bf16.mxu0 0
  %815 = vmatpush1.bf16.msra.mxu0 %v628
  %816 = vmatprep.subr.bf16.mxu0 0
  %817 = vmatpush1.bf16.msra.mxu0 %v629
  %818 = vmatprep.subr.bf16.mxu0 0
  %819 = vmatpush1.bf16.msra.mxu0 %v630
  %820 = vmatprep.subr.bf16.mxu0 0
  %821 = vmatpush1.bf16.msra.mxu0 %v631
  %822 = vmatprep.subr.bf16.mxu0 0
  %823 = vmatpush1.bf16.msra.mxu0 %v632
  %824 = vmatprep.subr.bf16.mxu0 0
  %825 = vmatpush1.bf16.msra.mxu0 %v633
  %826 = vmatprep.mubr.bf16.mxu0 %v185
  %827 = vmatmul.mubr.bf16.gmra.mrb[0].mxu0 %v181
  %v828 = vpop.f32.mrb[0].mxu0
  %v829 = vadd.f32 %v789, %v828
  %v830 = vpop.f32.mrb[0].mxu0
  %v831 = vpop.f32.mrb[0].mxu0
  %v832 = vpop.f32.mrb[0].mxu0
  %833 = vdwg.mxu0
  %834 = vmatprep.subr.bf16.mxu0 0
  %835 = vmatpush1.bf16.msra.mxu0 %v634
  %836 = vmatprep.subr.bf16.mxu0 0
  %837 = vmatpush1.bf16.msra.mxu0 %v635
  %838 = vmatprep.subr.bf16.mxu0 0
  %839 = vmatpush1.bf16.msra.mxu0 %v636
  %840 = vmatprep.subr.bf16.mxu0 0
  %841 = vmatpush1.bf16.msra.mxu0 %v637
  %842 = vmatprep.subr.bf16.mxu0 0
  %843 = vmatpush1.bf16.msra.mxu0 %v638
  %844 = vmatprep.subr.bf16.mxu0 0
  %845 = vmatpush1.bf16.msra.mxu0 %v639
  %846 = vmatprep.subr.bf16.mxu0 0
  %847 = vmatpush1.bf16.msra.mxu0 %v640
  %848 = vmatprep.subr.bf16.mxu0 0
  %849 = vmatpush1.bf16.msra.mxu0 %v641
  %850 = vmatprep.subr.bf16.mxu0 0
  %851 = vmatpush1.bf16.msra.mxu0 %v642
  %852 = vmatprep.subr.bf16.mxu0 0
  %853 = vmatpush1.bf16.msra.mxu0 %v643
  %854 = vmatprep.subr.bf16.mxu0 0
  %855 = vmatpush1.bf16.msra.mxu0 %v644
  %856 = vmatprep.subr.bf16.mxu0 0
  %857 = vmatpush1.bf16.msra.mxu0 %v645
  %858 = vmatprep.subr.bf16.mxu0 0
  %859 = vmatpush1.bf16.msra.mxu0 %v646
  %860 = vmatprep.subr.bf16.mxu0 0
  %861 = vmatpush1.bf16.msra.mxu0 %v647
  %862 = vmatprep.subr.bf16.mxu0 0
  %863 = vmatpush1.bf16.msra.mxu0 %v648
  %864 = vmatprep.subr.bf16.mxu0 0
  %865 = vmatpush1.bf16.msra.mxu0 %v649
  %866 = vmatprep.mubr.bf16.mxu0 %v193
  %867 = vmatmul.mubr.bf16.gmra.mrb[0].mxu0 %v189
  %v868 = vpop.f32.mrb[0].mxu0
  %v869 = vadd.f32 %v829, %v868
  %v870 = vpop.f32.mrb[0].mxu0
  %v871 = vpop.f32.mrb[0].mxu0
  %v872 = vpop.f32.mrb[0].mxu0
  %873 = vdwg.mxu0
  %v874 = vmax.f32 %v869, 0.0
  %v875 = vpack.c.bf16 %v874, %v874
  %v876 = vld [vmem:[%s5] sm:$0xf]
  %v877 = vld [vmem:[%s5 + $0x4] sm:$0xf]
  %v878 = vld [vmem:[%s5 + $0x8] sm:$0xf]
  %v879 = vld [vmem:[%s5 + $0xc] sm:$0xf]
  %v880 = vld [vmem:[%s5 + $0x10] sm:$0xf]
  %v881 = vld [vmem:[%s5 + $0x14] sm:$0xf]
  %v882 = vld [vmem:[%s5 + $0x18] sm:$0xf]
  %v883 = vld [vmem:[%s5 + $0x1c] sm:$0xf]
  %v884 = vld [vmem:[%s6] sm:$0x1]
  %v886 = vlaneseq
  %v887 = vshrl.u32 %v886, 7
  %v888 = vsub.s32 0, %v887
  %v889 = vrot.slane %v884, %v888
  %v899 = vunpack.c.l.b16 %v876
  %v900 = vunpack.c.l.b16 %v877
  %v901 = vunpack.c.l.b16 %v878
  %v902 = vunpack.c.l.b16 %v879
  %v903 = vunpack.c.l.b16 %v880
  %v904 = vunpack.c.l.b16 %v881
  %v905 = vunpack.c.l.b16 %v882
  %v906 = vunpack.c.l.b16 %v883
  %v907 = vpack.c.b16 %v900, %v899
  %v908 = vpack.c.b16 %v902, %v901
  %v909 = vpack.c.b16 %v904, %v903
  %v910 = vpack.c.b16 %v906, %v905
  %vm915 = vcmask 523264
  %v917 = vsel %vm915, %v875, 0
  %919 = vmatprep.subr.bf16.mxu0 0
  %920 = vmatpush1.bf16.msra.mxu0 %v907
  %921 = vmatprep.subr.bf16.mxu0 0
  %922 = vmatpush1.bf16.msra.mxu0 %v908
  %923 = vmatprep.subr.bf16.mxu0 0
  %924 = vmatpush1.bf16.msra.mxu0 %v909
  %925 = vmatprep.subr.bf16.mxu0 0
  %926 = vmatpush1.bf16.msra.mxu0 %v910
  %927 = vmatprep.subr.bf16.mxu0 0
  %928 = vmatpush1.bf16.msra.mxu0 0
  %929 = vmatprep.subr.bf16.mxu0 0
  %930 = vmatpush1.bf16.msra.mxu0 0
  %931 = vmatprep.subr.bf16.mxu0 0
  %932 = vmatpush1.bf16.msra.mxu0 0
  %933 = vmatprep.subr.bf16.mxu0 0
  %934 = vmatpush1.bf16.msra.mxu0 0
  %935 = vmatprep.subr.bf16.mxu0 0
  %936 = vmatpush1.bf16.msra.mxu0 0
  %937 = vmatprep.subr.bf16.mxu0 0
  %938 = vmatpush1.bf16.msra.mxu0 0
  %939 = vmatprep.subr.bf16.mxu0 0
  %940 = vmatpush1.bf16.msra.mxu0 0
  %941 = vmatprep.subr.bf16.mxu0 0
  %942 = vmatpush1.bf16.msra.mxu0 0
  %943 = vmatprep.subr.bf16.mxu0 0
  %944 = vmatpush1.bf16.msra.mxu0 0
  %945 = vmatprep.subr.bf16.mxu0 0
  %946 = vmatpush1.bf16.msra.mxu0 0
  %947 = vmatprep.subr.bf16.mxu0 0
  %948 = vmatpush1.bf16.msra.mxu0 0
  %949 = vmatprep.subr.bf16.mxu0 0
  %950 = vmatpush1.bf16.msra.mxu0 0
  %951 = vmatprep.mubr.bf16.mxu0 0
  %952 = vmatmul.mubr.bf16.gmra.mrb[0].mxu0 %v917
  %v953 = vpop.f32.mrb[0].mxu0
  %v954 = vadd.f32 %v889, %v953
  %v955 = vpop.f32.mrb[0].mxu0
  %v956 = vpop.f32.mrb[0].mxu0
  %v957 = vpop.f32.mrb[0].mxu0
  %958 = vdwg.mxu0
  %v959 = vmax.f32 %v954, 0.0
  %v960 = vpack.c.bf16 %v959, %v959
  %v961 = vld [vmem:[%s7] sm:$0xf]
  %v962 = vld [vmem:[%s7 + $0x4] sm:$0xf]
  %v963 = vld [vmem:[%s7 + $0x8] sm:$0xf]
  %v964 = vld [vmem:[%s7 + $0xc] sm:$0xf]
  %v965 = vld [vmem:[%s7 + $0x10] sm:$0xf]
  %v966 = vld [vmem:[%s7 + $0x14] sm:$0xf]
  %v967 = vld [vmem:[%s7 + $0x18] sm:$0xf]
  %v968 = vld [vmem:[%s7 + $0x1c] sm:$0xf]
  %v969 = vld [vmem:[%s8] sm:$0x1]
  %v971 = vlaneseq
  %v972 = vshrl.u32 %v971, 7
  %v973 = vsub.s32 0, %v972
  %v974 = vrot.slane %v969, %v973
  %v984 = vunpack.c.l.b16 %v961
  %v985 = vunpack.c.l.b16 %v962
  %v986 = vunpack.c.l.b16 %v963
  %v987 = vunpack.c.l.b16 %v964
  %v988 = vunpack.c.l.b16 %v965
  %v989 = vunpack.c.l.b16 %v966
  %v990 = vunpack.c.l.b16 %v967
  %v991 = vunpack.c.l.b16 %v968
  %v992 = vpack.c.b16 %v985, %v984
  %v993 = vpack.c.b16 %v987, %v986
  %v994 = vpack.c.b16 %v989, %v988
  %v995 = vpack.c.b16 %v991, %v990
  %v1001 = vsel %vm915, %v960, 0
  %1003 = vmatprep.subr.bf16.mxu0 0
  %1004 = vmatpush1.bf16.msra.mxu0 %v992
  %1005 = vmatprep.subr.bf16.mxu0 0
  %1006 = vmatpush1.bf16.msra.mxu0 %v993
  %1007 = vmatprep.subr.bf16.mxu0 0
  %1008 = vmatpush1.bf16.msra.mxu0 %v994
  %1009 = vmatprep.subr.bf16.mxu0 0
  %1010 = vmatpush1.bf16.msra.mxu0 %v995
  %1011 = vmatprep.subr.bf16.mxu0 0
  %1012 = vmatpush1.bf16.msra.mxu0 0
  %1013 = vmatprep.subr.bf16.mxu0 0
  %1014 = vmatpush1.bf16.msra.mxu0 0
  %1015 = vmatprep.subr.bf16.mxu0 0
  %1016 = vmatpush1.bf16.msra.mxu0 0
  %1017 = vmatprep.subr.bf16.mxu0 0
  %1018 = vmatpush1.bf16.msra.mxu0 0
  %1019 = vmatprep.subr.bf16.mxu0 0
  %1020 = vmatpush1.bf16.msra.mxu0 0
  %1021 = vmatprep.subr.bf16.mxu0 0
  %1022 = vmatpush1.bf16.msra.mxu0 0
  %1023 = vmatprep.subr.bf16.mxu0 0
  %1024 = vmatpush1.bf16.msra.mxu0 0
  %1025 = vmatprep.subr.bf16.mxu0 0
  %1026 = vmatpush1.bf16.msra.mxu0 0
  %1027 = vmatprep.subr.bf16.mxu0 0
  %1028 = vmatpush1.bf16.msra.mxu0 0
  %1029 = vmatprep.subr.bf16.mxu0 0
  %1030 = vmatpush1.bf16.msra.mxu0 0
  %1031 = vmatprep.subr.bf16.mxu0 0
  %1032 = vmatpush1.bf16.msra.mxu0 0
  %1033 = vmatprep.subr.bf16.mxu0 0
  %1034 = vmatpush1.bf16.msra.mxu0 0
  %1035 = vmatprep.mubr.bf16.mxu0 0
  %1036 = vmatmul.mubr.bf16.gmra.mrb[0].mxu0 %v1001
  %v1037 = vpop.f32.mrb[0].mxu0
  %v1038 = vadd.f32 %v974, %v1037
  %v1039 = vpop.f32.mrb[0].mxu0
  %v1040 = vpop.f32.mrb[0].mxu0
  %v1041 = vpop.f32.mrb[0].mxu0
  %1042 = vdwg.mxu0
  %v1043 = vld [vmem:[%s2] sm:$0x1]
  %v1044 = vld [vmem:[%s9] sm:$0xf]
  %v1045 = vld [vmem:[%s10] sm:$0x1]
  %v1047 = vlaneseq
  %v1048 = vshrl.u32 %v1047, 7
  %v1049 = vsub.s32 0, %v1048
  %v1050 = vrot.slane %v1045, %v1049
  %vm1052 = vcmask 64512
  %v1054 = vsel %vm1052, %v1043, 0
  %vm1056 = vcmask 1043456
  %v1058 = vsel %vm1056, %v1044, 0
  %1060 = vmatprep.subr.bf16.mxu0 0
  %1061 = vmatpush1.bf16.msra.mxu0 %v1058
  %1062 = vmatprep.subr.bf16.mxu0 0
  %1063 = vmatpush1.bf16.msra.mxu0 0
  %1064 = vmatprep.subr.bf16.mxu0 0
  %1065 = vmatpush1.bf16.msra.mxu0 0
  %1066 = vmatprep.subr.bf16.mxu0 0
  %1067 = vmatpush1.bf16.msra.mxu0 0
  %1068 = vmatprep.subr.bf16.mxu0 0
  %1069 = vmatpush1.bf16.msra.mxu0 0
  %1070 = vmatprep.subr.bf16.mxu0 0
  %1071 = vmatpush1.bf16.msra.mxu0 0
  %1072 = vmatprep.subr.bf16.mxu0 0
  %1073 = vmatpush1.bf16.msra.mxu0 0
  %1074 = vmatprep.subr.bf16.mxu0 0
  %1075 = vmatpush1.bf16.msra.mxu0 0
  %1076 = vmatprep.subr.bf16.mxu0 0
  %1077 = vmatpush1.bf16.msra.mxu0 0
  %1078 = vmatprep.subr.bf16.mxu0 0
  %1079 = vmatpush1.bf16.msra.mxu0 0
  %1080 = vmatprep.subr.bf16.mxu0 0
  %1081 = vmatpush1.bf16.msra.mxu0 0
  %1082 = vmatprep.subr.bf16.mxu0 0
  %1083 = vmatpush1.bf16.msra.mxu0 0
  %1084 = vmatprep.subr.bf16.mxu0 0
  %1085 = vmatpush1.bf16.msra.mxu0 0
  %1086 = vmatprep.subr.bf16.mxu0 0
  %1087 = vmatpush1.bf16.msra.mxu0 0
  %1088 = vmatprep.subr.bf16.mxu0 0
  %1089 = vmatpush1.bf16.msra.mxu0 0
  %1090 = vmatprep.subr.bf16.mxu0 0
  %1091 = vmatpush1.bf16.msra.mxu0 0
  %1092 = vmatprep.mubr.bf16.mxu0 0
  %1093 = vmatmul.mubr.bf16.gmra.mrb[0].mxu0 %v1054
  %v1094 = vpop.f32.mrb[0].mxu0
  %v1095 = vadd.f32 %v1050, %v1094
  %v1096 = vpop.f32.mrb[0].mxu0
  %v1097 = vpop.f32.mrb[0].mxu0
  %v1098 = vpop.f32.mrb[0].mxu0
  %1099 = vdwg.mxu0
  %v1100 = vpack.c.bf16 %v1038, %v1038
  %v1101 = vld [vmem:[%s11] sm:$0xf]
  %v1102 = vld [vmem:[%s11 + $0x4] sm:$0xf]
  %v1103 = vld [vmem:[%s11 + $0x8] sm:$0xf]
  %v1104 = vld [vmem:[%s11 + $0xc] sm:$0xf]
  %v1105 = vld [vmem:[%s13] sm:$0x1]
  %v1107 = vlaneseq
  %v1108 = vshrl.u32 %v1107, 7
  %v1109 = vsub.s32 0, %v1108
  %v1110 = vrot.slane %v1105, %v1109
  %v1116 = vunpack.c.l.b16 %v1101
  %v1117 = vunpack.c.l.b16 %v1102
  %v1118 = vunpack.c.l.b16 %v1103
  %v1119 = vunpack.c.l.b16 %v1104
  %v1120 = vpack.c.b16 %v1117, %v1116
  %v1121 = vpack.c.b16 %v1119, %v1118
  %vm1124 = vcmask 261120
  %v1126 = vsel %vm1124, %v1100, 0
  %1128 = vmatprep.subr.bf16.mxu0 0
  %1129 = vmatpush1.bf16.msra.mxu0 %v1120
  %1130 = vmatprep.subr.bf16.mxu0 0
  %1131 = vmatpush1.bf16.msra.mxu0 %v1121
  %1132 = vmatprep.subr.bf16.mxu0 0
  %1133 = vmatpush1.bf16.msra.mxu0 0
  %1134 = vmatprep.subr.bf16.mxu0 0
  %1135 = vmatpush1.bf16.msra.mxu0 0
  %1136 = vmatprep.subr.bf16.mxu0 0
  %1137 = vmatpush1.bf16.msra.mxu0 0
  %1138 = vmatprep.subr.bf16.mxu0 0
  %1139 = vmatpush1.bf16.msra.mxu0 0
  %1140 = vmatprep.subr.bf16.mxu0 0
  %1141 = vmatpush1.bf16.msra.mxu0 0
  %1142 = vmatprep.subr.bf16.mxu0 0
  %1143 = vmatpush1.bf16.msra.mxu0 0
  %1144 = vmatprep.subr.bf16.mxu0 0
  %1145 = vmatpush1.bf16.msra.mxu0 0
  %1146 = vmatprep.subr.bf16.mxu0 0
  %1147 = vmatpush1.bf16.msra.mxu0 0
  %1148 = vmatprep.subr.bf16.mxu0 0
  %1149 = vmatpush1.bf16.msra.mxu0 0
  %1150 = vmatprep.subr.bf16.mxu0 0
  %1151 = vmatpush1.bf16.msra.mxu0 0
  %1152 = vmatprep.subr.bf16.mxu0 0
  %1153 = vmatpush1.bf16.msra.mxu0 0
  %1154 = vmatprep.subr.bf16.mxu0 0
  %1155 = vmatpush1.bf16.msra.mxu0 0
  %1156 = vmatprep.subr.bf16.mxu0 0
  %1157 = vmatpush1.bf16.msra.mxu0 0
  %1158 = vmatprep.subr.bf16.mxu0 0
  %1159 = vmatpush1.bf16.msra.mxu0 0
  %1160 = vmatprep.mubr.bf16.mxu0 0
  %1161 = vmatmul.mubr.bf16.gmra.mrb[0].mxu0 %v1126
  %v1162 = vpop.f32.mrb[0].mxu0
  %v1163 = vadd.f32 %v1110, %v1162
  %v1164 = vpop.f32.mrb[0].mxu0
  %v1165 = vpop.f32.mrb[0].mxu0
  %v1166 = vpop.f32.mrb[0].mxu0
  %1167 = vdwg.mxu0
  %v1168 = vpack.c.bf16 %v1095, %v1095
  %v1169 = vld [vmem:[%s12] sm:$0xf]
  %v1170 = vld [vmem:[%s12 + $0x4] sm:$0xf]
  %v1173 = vunpack.c.l.b16 %v1169
  %v1174 = vunpack.c.l.b16 %v1170
  %v1175 = vpack.c.b16 %v1174, %v1173
  %vm1177 = vcmask 130048
  %v1179 = vsel %vm1177, %v1168, 0
  %1181 = vmatprep.subr.bf16.mxu0 0
  %1182 = vmatpush1.bf16.msra.mxu0 %v1175
  %1183 = vmatprep.subr.bf16.mxu0 0
  %1184 = vmatpush1.bf16.msra.mxu0 0
  %1185 = vmatprep.subr.bf16.mxu0 0
  %1186 = vmatpush1.bf16.msra.mxu0 0
  %1187 = vmatprep.subr.bf16.mxu0 0
  %1188 = vmatpush1.bf16.msra.mxu0 0
  %1189 = vmatprep.subr.bf16.mxu0 0
  %1190 = vmatpush1.bf16.msra.mxu0 0
  %1191 = vmatprep.subr.bf16.mxu0 0
  %1192 = vmatpush1.bf16.msra.mxu0 0
  %1193 = vmatprep.subr.bf16.mxu0 0
  %1194 = vmatpush1.bf16.msra.mxu0 0
  %1195 = vmatprep.subr.bf16.mxu0 0
  %1196 = vmatpush1.bf16.msra.mxu0 0
  %1197 = vmatprep.subr.bf16.mxu0 0
  %1198 = vmatpush1.bf16.msra.mxu0 0
  %1199 = vmatprep.subr.bf16.mxu0 0
  %1200 = vmatpush1.bf16.msra.mxu0 0
  %1201 = vmatprep.subr.bf16.mxu0 0
  %1202 = vmatpush1.bf16.msra.mxu0 0
  %1203 = vmatprep.subr.bf16.mxu0 0
  %1204 = vmatpush1.bf16.msra.mxu0 0
  %1205 = vmatprep.subr.bf16.mxu0 0
  %1206 = vmatpush1.bf16.msra.mxu0 0
  %1207 = vmatprep.subr.bf16.mxu0 0
  %1208 = vmatpush1.bf16.msra.mxu0 0
  %1209 = vmatprep.subr.bf16.mxu0 0
  %1210 = vmatpush1.bf16.msra.mxu0 0
  %1211 = vmatprep.subr.bf16.mxu0 0
  %1212 = vmatpush1.bf16.msra.mxu0 0
  %1213 = vmatprep.mubr.bf16.mxu0 0
  %1214 = vmatmul.mubr.bf16.gmra.mrb[0].mxu0 %v1179
  %v1215 = vpop.f32.mrb[0].mxu0
  %v1216 = vadd.f32 0.0, %v1215
  %v1217 = vpop.f32.mrb[0].mxu0
  %v1218 = vpop.f32.mrb[0].mxu0
  %v1219 = vpop.f32.mrb[0].mxu0
  %1220 = vdwg.mxu0
  %v1221 = vadd.f32 %v1163, %v1216
  %v1222 = vmul.f32 %v1221, 0.5
  %v1223 = vmul.f32 %v1221, 0.70710677
  %v1224 = vand.u32 2147483647, %v1223
  %v1225 = vmul.f32 %v1224, 0.3275911
  %v1226 = vadd.f32 %v1225, 1.0
  %v1227 = vrcp.pop %v1226
  %v1228 = vmul.f32 %v1227, 1.0614054
  %v1229 = vsub.f32 %v1228, 1.4531521
  %v1230 = vmul.f32 %v1229, %v1227
  %v1231 = vadd.f32 %v1230, 1.4214138
  %v1232 = vmul.f32 %v1231, %v1227
  %v1233 = vsub.f32 %v1232, 0.28449672
  %v1234 = vmul.f32 %v1233, %v1227
  %v1235 = vadd.f32 %v1234, 0.2548296
  %v1236 = vmul.f32 %v1235, %v1227
  %v1237 = vsub.f32 0.0, %v1224
  %v1238 = vmul.f32 %v1237, %v1224
  %v1239 = vmul.f32 %v1238, 1.442695
  %v1240 = vpow.pop %v1239
  %v1241 = vmul.f32 %v1236, %v1240
  %v1242 = vsub.f32 1.0, %v1241
  %vm1243 = vcmp.lt.f32.partialorder %v1223, 0.0
  %v1244 = vsub.f32 0.0, %v1242
  %v1245 = vsel %vm1243, %v1244, %v1242
  %v1246 = vadd.f32 %v1245, 1.0
  %v1247 = vmul.f32 %v1222, %v1246
  %v1248 = vpack.c.bf16 %v1247, %v1247
  %v1249 = vld [vmem:[%s14] sm:$0xf]
  %v1250 = vld [vmem:[%s14 + $0x4] sm:$0xf]
  %v1251 = vld [vmem:[%s14 + $0x8] sm:$0xf]
  %v1252 = vld [vmem:[%s14 + $0xc] sm:$0xf]
  %v1253 = vld [vmem:[%s14 + $0x10] sm:$0xf]
  %v1254 = vld [vmem:[%s14 + $0x14] sm:$0xf]
  %v1255 = vld [vmem:[%s14 + $0x18] sm:$0xf]
  %v1256 = vld [vmem:[%s14 + $0x1c] sm:$0xf]
  %v1257 = vld [vmem:[%s15] sm:$0x1]
  %v1259 = vlaneseq
  %v1260 = vshrl.u32 %v1259, 7
  %v1261 = vsub.s32 0, %v1260
  %v1262 = vrot.slane %v1257, %v1261
  %v1272 = vunpack.c.l.b16 %v1249
  %v1273 = vunpack.c.l.b16 %v1250
  %v1274 = vunpack.c.l.b16 %v1251
  %v1275 = vunpack.c.l.b16 %v1252
  %v1276 = vunpack.c.l.b16 %v1253
  %v1277 = vunpack.c.l.b16 %v1254
  %v1278 = vunpack.c.l.b16 %v1255
  %v1279 = vunpack.c.l.b16 %v1256
  %v1280 = vpack.c.b16 %v1273, %v1272
  %v1281 = vpack.c.b16 %v1275, %v1274
  %v1282 = vpack.c.b16 %v1277, %v1276
  %v1283 = vpack.c.b16 %v1279, %v1278
  %v1289 = vsel %vm915, %v1248, 0
  %1291 = vmatprep.subr.bf16.mxu0 0
  %1292 = vmatpush1.bf16.msra.mxu0 %v1280
  %1293 = vmatprep.subr.bf16.mxu0 0
  %1294 = vmatpush1.bf16.msra.mxu0 %v1281
  %1295 = vmatprep.subr.bf16.mxu0 0
  %1296 = vmatpush1.bf16.msra.mxu0 %v1282
  %1297 = vmatprep.subr.bf16.mxu0 0
  %1298 = vmatpush1.bf16.msra.mxu0 %v1283
  %1299 = vmatprep.subr.bf16.mxu0 0
  %1300 = vmatpush1.bf16.msra.mxu0 0
  %1301 = vmatprep.subr.bf16.mxu0 0
  %1302 = vmatpush1.bf16.msra.mxu0 0
  %1303 = vmatprep.subr.bf16.mxu0 0
  %1304 = vmatpush1.bf16.msra.mxu0 0
  %1305 = vmatprep.subr.bf16.mxu0 0
  %1306 = vmatpush1.bf16.msra.mxu0 0
  %1307 = vmatprep.subr.bf16.mxu0 0
  %1308 = vmatpush1.bf16.msra.mxu0 0
  %1309 = vmatprep.subr.bf16.mxu0 0
  %1310 = vmatpush1.bf16.msra.mxu0 0
  %1311 = vmatprep.subr.bf16.mxu0 0
  %1312 = vmatpush1.bf16.msra.mxu0 0
  %1313 = vmatprep.subr.bf16.mxu0 0
  %1314 = vmatpush1.bf16.msra.mxu0 0
  %1315 = vmatprep.subr.bf16.mxu0 0
  %1316 = vmatpush1.bf16.msra.mxu0 0
  %1317 = vmatprep.subr.bf16.mxu0 0
  %1318 = vmatpush1.bf16.msra.mxu0 0
  %1319 = vmatprep.subr.bf16.mxu0 0
  %1320 = vmatpush1.bf16.msra.mxu0 0
  %1321 = vmatprep.subr.bf16.mxu0 0
  %1322 = vmatpush1.bf16.msra.mxu0 0
  %1323 = vmatprep.mubr.bf16.mxu0 0
  %1324 = vmatmul.mubr.bf16.gmra.mrb[0].mxu0 %v1289
  %v1325 = vpop.f32.mrb[0].mxu0
  %v1326 = vadd.f32 %v1262, %v1325
  %v1327 = vpop.f32.mrb[0].mxu0
  %v1328 = vpop.f32.mrb[0].mxu0
  %v1329 = vpop.f32.mrb[0].mxu0
  %1330 = vdwg.mxu0
  %v1331 = vmul.f32 %v1326, 0.5
  %v1332 = vmul.f32 %v1326, 0.70710677
  %v1333 = vand.u32 2147483647, %v1332
  %v1334 = vmul.f32 %v1333, 0.3275911
  %v1335 = vadd.f32 %v1334, 1.0
  %v1336 = vrcp.pop %v1335
  %v1337 = vmul.f32 %v1336, 1.0614054
  %v1338 = vsub.f32 %v1337, 1.4531521
  %v1339 = vmul.f32 %v1338, %v1336
  %v1340 = vadd.f32 %v1339, 1.4214138
  %v1341 = vmul.f32 %v1340, %v1336
  %v1342 = vsub.f32 %v1341, 0.28449672
  %v1343 = vmul.f32 %v1342, %v1336
  %v1344 = vadd.f32 %v1343, 0.2548296
  %v1345 = vmul.f32 %v1344, %v1336
  %v1346 = vsub.f32 0.0, %v1333
  %v1347 = vmul.f32 %v1346, %v1333
  %v1348 = vmul.f32 %v1347, 1.442695
  %v1349 = vpow.pop %v1348
  %v1350 = vmul.f32 %v1345, %v1349
  %v1351 = vsub.f32 1.0, %v1350
  %vm1352 = vcmp.lt.f32.partialorder %v1332, 0.0
  %v1353 = vsub.f32 0.0, %v1351
  %v1354 = vsel %vm1352, %v1353, %v1351
  %v1355 = vadd.f32 %v1354, 1.0
  %v1356 = vmul.f32 %v1331, %v1355
  %v1357 = vpack.c.bf16 %v1356, %v1356
  %v1358 = vld [vmem:[%s16] sm:$0xf]
  %v1359 = vld [vmem:[%s16 + $0x4] sm:$0xf]
  %v1360 = vld [vmem:[%s16 + $0x8] sm:$0xf]
  %v1361 = vld [vmem:[%s16 + $0xc] sm:$0xf]
  %v1362 = vld [vmem:[%s16 + $0x10] sm:$0xf]
  %v1363 = vld [vmem:[%s16 + $0x14] sm:$0xf]
  %v1364 = vld [vmem:[%s16 + $0x18] sm:$0xf]
  %v1365 = vld [vmem:[%s16 + $0x1c] sm:$0xf]
  %v1366 = vld [vmem:[%s17] sm:$0x1]
  %v1368 = vlaneseq
  %v1369 = vshrl.u32 %v1368, 7
  %v1370 = vsub.s32 0, %v1369
  %v1371 = vrot.slane %v1366, %v1370
  %v1381 = vunpack.c.l.b16 %v1358
  %v1382 = vunpack.c.l.b16 %v1359
  %v1383 = vunpack.c.l.b16 %v1360
  %v1384 = vunpack.c.l.b16 %v1361
  %v1385 = vunpack.c.l.b16 %v1362
  %v1386 = vunpack.c.l.b16 %v1363
  %v1387 = vunpack.c.l.b16 %v1364
  %v1388 = vunpack.c.l.b16 %v1365
  %v1389 = vpack.c.b16 %v1382, %v1381
  %v1390 = vpack.c.b16 %v1384, %v1383
  %v1391 = vpack.c.b16 %v1386, %v1385
  %v1392 = vpack.c.b16 %v1388, %v1387
  %v1398 = vsel %vm915, %v1357, 0
  %1400 = vmatprep.subr.bf16.mxu0 0
  %1401 = vmatpush1.bf16.msra.mxu0 %v1389
  %1402 = vmatprep.subr.bf16.mxu0 0
  %1403 = vmatpush1.bf16.msra.mxu0 %v1390
  %1404 = vmatprep.subr.bf16.mxu0 0
  %1405 = vmatpush1.bf16.msra.mxu0 %v1391
  %1406 = vmatprep.subr.bf16.mxu0 0
  %1407 = vmatpush1.bf16.msra.mxu0 %v1392
  %1408 = vmatprep.subr.bf16.mxu0 0
  %1409 = vmatpush1.bf16.msra.mxu0 0
  %1410 = vmatprep.subr.bf16.mxu0 0
  %1411 = vmatpush1.bf16.msra.mxu0 0
  %1412 = vmatprep.subr.bf16.mxu0 0
  %1413 = vmatpush1.bf16.msra.mxu0 0
  %1414 = vmatprep.subr.bf16.mxu0 0
  %1415 = vmatpush1.bf16.msra.mxu0 0
  %1416 = vmatprep.subr.bf16.mxu0 0
  %1417 = vmatpush1.bf16.msra.mxu0 0
  %1418 = vmatprep.subr.bf16.mxu0 0
  %1419 = vmatpush1.bf16.msra.mxu0 0
  %1420 = vmatprep.subr.bf16.mxu0 0
  %1421 = vmatpush1.bf16.msra.mxu0 0
  %1422 = vmatprep.subr.bf16.mxu0 0
  %1423 = vmatpush1.bf16.msra.mxu0 0
  %1424 = vmatprep.subr.bf16.mxu0 0
  %1425 = vmatpush1.bf16.msra.mxu0 0
  %1426 = vmatprep.subr.bf16.mxu0 0
  %1427 = vmatpush1.bf16.msra.mxu0 0
  %1428 = vmatprep.subr.bf16.mxu0 0
  %1429 = vmatpush1.bf16.msra.mxu0 0
  %1430 = vmatprep.subr.bf16.mxu0 0
  %1431 = vmatpush1.bf16.msra.mxu0 0
  %1432 = vmatprep.mubr.bf16.mxu0 0
  %1433 = vmatmul.mubr.bf16.gmra.mrb[0].mxu0 %v1398
  %v1434 = vpop.f32.mrb[0].mxu0
  %v1435 = vadd.f32 %v1371, %v1434
  %v1436 = vpop.f32.mrb[0].mxu0
  %v1437 = vpop.f32.mrb[0].mxu0
  %v1438 = vpop.f32.mrb[0].mxu0
  %1439 = vdwg.mxu0
  %vm1440 = vcmask 1041408
  %v1441 = vsel %vm1440, %v1435, 0.0
  %1443 = vrot.lane.b32.xlu0 %v1441, 64
  %v1444 = vpop.permute.xlu0 %1443
  %v1446 = vsel %vm915, %v1038, %v1444
  %vm1447 = vcmask 785408
  %v1448 = vsel %vm1447, %v1446, 0.0
  %1449 = vst [vmem:[%s18] sm:$0xf] %v1448
  // Predicated region
  $region74: #{jepa_forward.1} parent=0 // pred_check
    _
  $region75: #{jepa_forward.1} parent=0 // pred_check_branch
    %1451 = sbr.rel (0) target = $region77
  $region76: #{jepa_forward.1} parent=0 // pred_region
    _
  $region77: #{jepa_forward.1} parent=0 // pred_fallthru
    _
  // Predicated region
  $region78: #{jepa_forward.1} parent=0 // pred_check
    _
  $region79: #{jepa_forward.1} parent=0 // pred_check_branch
    %1453 = sbr.rel (0) target = $region81
  $region80: #{jepa_forward.1} parent=0 // pred_region
    _
  $region81: #{jepa_forward.1} parent=0 // pred_fallthru
    _

</llo_original>
